<compile_context>
chip_gen: v5e
topology: v5e:2x2
jax: 0.10.0
libtpu: 0.0.40
codegen_flags: <defaults>
</compile_context>

<pallas_src>
import functools

import jax
import jax.numpy as jnp
from jax.experimental import pallas as pl
from jax.experimental.pallas import tpu as pltpu


# -----------------------------------------------------------------------------
# Phase 1: disp_conv + partial d_feas reduction.
# -----------------------------------------------------------------------------
def _disp_dfeas_kernel(x_ref, m_ref, w1_ref, b1_ref, w2_ref, b2_ref,
                       feats_ref, dfeas_ref, fbuf_ref,
                       *, c_blk, compute_dtype, m_transposed):
    f32 = jnp.float32

    @pl.when(pl.program_id(3) == 0)
    def _init():
        dfeas_ref[...] = jnp.zeros_like(dfeas_ref)

    w1 = w1_ref[...]            # [D, D]  compute dtype (MXU operand)
    b1 = b1_ref[...]            # [D, 1]  f32
    w2 = w2_ref[...]            # [1, D]  compute dtype (D -> 1 on the MXU)
    b2 = b2_ref[...]            # [1, 1]  f32

    # Bounded static unroll over the channels of this block; each [1, T] row is
    # streamed straight into a f32 VMEM scratch (no rows list / concatenate).
    for c in range(c_blk):
        xc = x_ref[0, c].astype(compute_dtype)           # in-kernel cast (free VPU filler)
        h1 = jnp.maximum(
            jnp.dot(w1, xc, preferred_element_type=f32) + b1, 0.0)
        fc = jnp.maximum(
            jnp.dot(w2, h1.astype(compute_dtype),
                    preferred_element_type=f32) + b2, 0.0)          # [1, T]
        fbuf_ref[pl.ds(c, 1), :] = fc

    feats = fbuf_ref[...]                                           # [Cb, T] f32
    feats_ref[0] = feats.astype(feats_ref.dtype)                    # full lane-dense store

    feats_c = feats.astype(compute_dtype)
    if m_transposed:
        # M tile is [T, D]: MXU-native A @ B (no per-tile transpose when D >= 128)
        delta = jax.lax.dot_general(feats_c, m_ref[0], (((1,), (0,)), ((), ())),
                                    preferred_element_type=f32)
    else:
        # M tile is [D, T]: contract over the HW (lane) axis of both operands
        delta = jax.lax.dot_general(feats_c, m_ref[0], (((1,), (1,)), ((), ())),
                                    preferred_element_type=f32)
    dfeas_ref[0, 0] = dfeas_ref[0, 0] + delta                       # [Cb, D]


# -----------------------------------------------------------------------------
# Phase 2: ObjectAttention (query path) + final_conv + classifier.
# key/value are precomputed per batch (tiny) and passed in.
# -----------------------------------------------------------------------------
def _attention_head_kernel(feats_ref, key_ref, value_ref, w3_ref, b3_ref,
                           wfy_ref, wff_ref, bfin_ref, wcls_ref, bcls_ref,
                           out_ref, *, compute_dtype):
    f32 = jnp.float32
    relu = lambda v: jnp.maximum(v, 0.0)

    def lin(w, act, b):          # W [O, I] @ act [I, N] + b [O, 1], f32 accumulation
        return jnp.dot(w, act, preferred_element_type=f32) + b

    feats = feats_ref[0]                                        # [C, T] compute dtype
    key = key_ref[0]                                            # [K, D] compute dtype
    value = value_ref[0]                                        # [K, D] compute dtype

    # stacked 1x1 convbn weights: 0 psi1, 1 psi2, 2 f_up
    q1 = relu(lin(w3_ref[0], feats, b3_ref[0])).astype(compute_dtype)    # [C, T]
    query = relu(lin(w3_ref[1], q1, b3_ref[1])).astype(compute_dtype)    # [K, T]

    # sim^T[d, n] = sum_k key[k, d] * query[k, n]; softmax over d (sublane axis)
    sim = jax.lax.dot_general(key, query, (((0,), (0,)), ((), ())),
                              preferred_element_type=f32)                # [D, T]
    e = jnp.exp(sim - jnp.max(sim, axis=0, keepdims=True))
    attn = (e * pl.reciprocal(jnp.sum(e, axis=0, keepdims=True),
                              approx=True)).astype(compute_dtype)        # [D, T]

    ctx = jnp.dot(value, attn,
                  preferred_element_type=f32).astype(compute_dtype)      # [K, T]
    y = relu(lin(w3_ref[2], ctx, b3_ref[2])).astype(compute_dtype)       # [C, T]

    # final_conv on concat([y, feats], channel) without an explicit concat
    z = relu(jnp.dot(wfy_ref[...], y, preferred_element_type=f32)
             + jnp.dot(wff_ref[...], feats, preferred_element_type=f32)
             + bfin_ref[...]).astype(compute_dtype)                      # [128, T]

    # classifier -> lane-dense [D, T] store
    out_ref[0] = (jnp.dot(wcls_ref[...], z, preferred_element_type=f32)
                  + bcls_ref[...]).astype(out_ref.dtype)


# -----------------------------------------------------------------------------
# Generation-aware tile / VMEM sizing helpers.
# -----------------------------------------------------------------------------
def _vmem_capacity_bytes():
    try:
        info = pltpu.get_tpu_info()
        cap = getattr(info, "vmem_capacity_bytes", None)
        if cap:
            return int(cap)
    except Exception:
        pass
    return 64 << 20      # conservative fallback: v7x per-TensorCore VMEM


def _pick_tile(hw, bytes_per_col, *, budget_bytes, max_tile=8192):
    """Largest 128-aligned tile dividing hw that fits the per-step VMEM budget."""
    assert hw % 128 == 0
    cap = max(128, min(max_tile, budget_bytes // max(int(bytes_per_col), 1)))
    t = max(128, min((cap // 128) * 128, hw))
    while hw % t != 0:
        t -= 128
    return t


def _vmem_limit(need_bytes, cap_bytes):
    req = int(need_bytes * 1.5) + (4 << 20)                 # headroom
    return int(min(max(req, min(32 << 20, cap_bytes)), cap_bytes))


def _channel_block(c_num):
    for cand in (32, 16, 8):
        if c_num % cand == 0 and c_num >= 2 * cand:
            return cand
    return c_num


# -----------------------------------------------------------------------------
# Wrapper: layout plumbing + the two pallas_calls.
# -----------------------------------------------------------------------------
def ocr_pallas(x, cost, params, *, compute_dtype=jnp.float32, out_dtype=None,
               tile_hw1=None, tile_hw2=None):
    """x: [B, C, D, H, W], cost: [B, 1, D, H, W] -> [B, D, H, W] (PyTorch NCHW).

    compute_dtype: dtype of MXU operands (activations + weights); bf16 is useful
    on v5e/v6e/v7x (MXU-native, halves the feats/M byte streams).  Accumulation
    and all VPU/EUP elementwise math stay in f32.  out_dtype: classifier output
    dtype (default f32).
    """
    B, C, D, H, W = x.shape
    HW = H * W
    cd = jnp.dtype(compute_dtype)
    od = jnp.dtype(out_dtype) if out_dtype is not None else jnp.dtype(jnp.float32)
    f32 = jnp.float32
    x_isz = jnp.dtype(x.dtype).itemsize
    c_isz = cd.itemsize
    o_isz = od.itemsize

    vmem_cap = _vmem_capacity_bytes()
    blk_budget = int(min(vmem_cap // 5, 28 << 20))           # ~12.8 MiB v7x, ~25.6 MiB v5e/v6e
    limit_cap = int(min(int(vmem_cap * 0.8), 112 << 20))     # ~51 MiB cap on v7x

    # ---- pad HW to a multiple of 128 (lane-dense tiles, no masked vld/vst) -------
    HWp = ((HW + 127) // 128) * 128
    pad = HWp - HW
    x4d = x.reshape(B, C, D, HW)                   # keep HBM dtype; no wrapper astype of x
    M = jax.nn.softmax(cost.reshape(B, D, HW).astype(f32), axis=-1)
    if pad:
        # Zero-padded M columns carry no softmax mass, so d_feas ignores the
        # (garbage) feats from padded x columns; padded output columns are
        # sliced off at the end.
        x4d = jnp.pad(x4d, ((0, 0), (0, 0), (0, 0), (0, pad)))
        M = jnp.pad(M, ((0, 0), (0, 0), (0, pad)))

    m_transposed = D >= 128
    M_in = (jnp.swapaxes(M, 1, 2) if m_transposed else M).astype(cd)

    # ---- disp_conv weights (conv+BN folded, channels-first matrices) ------------
    w1, b1 = params["disp1"]                     # [D, D], [D]
    w2, b2 = params["disp2"]                     # [1, D], [1]
    w1_k = w1.astype(cd)
    b1_k = b1.astype(f32)[:, None]               # [D, 1]
    w2_k = w2.astype(cd)                         # [1, D]
    b2_k = b2.astype(f32).reshape(1, 1)

    # ---- phase-1 tiling ----------------------------------------------------------
    Cb = _channel_block(C)
    n_cb = C // Cb
    col1 = 2 * (Cb * D * x_isz + D * c_isz + Cb * c_isz) + (4 + c_isz) * D + 8 * Cb + 32
    T1 = tile_hw1 if tile_hw1 is not None else _pick_tile(HWp, col1, budget_bytes=blk_budget)
    assert HWp % T1 == 0 and T1 % 128 == 0, (HWp, T1)
    n1 = HWp // T1
    if n1 == 1 and B * n_cb < 2 and T1 % 256 == 0:      # keep both v7x TCs busy
        T1 //= 2
        n1 = 2
    S = 2 if (n1 % 2 == 0 and n1 >= 2) else 1           # HW split -> 2 partial d_feas accums
    n1s = n1 // S

    need1 = (2 * T1 * (Cb * D * x_isz + D * c_isz + Cb * c_isz)
             + 4 * Cb * T1                               # f32 feats scratch
             + 8 * Cb * D + c_isz * (D * D + D) + 64
             + (4 + c_isz) * D * T1 + 16 * T1)
    vmem1 = _vmem_limit(need1, limit_cap)

    m_spec = (pl.BlockSpec((1, T1, D), lambda s, b, cb, t: (b, s * n1s + t, 0))
              if m_transposed else
              pl.BlockSpec((1, D, T1), lambda s, b, cb, t: (b, 0, s * n1s + t)))

    feats, dfeas_parts = pl.pallas_call(
        functools.partial(_disp_dfeas_kernel, c_blk=Cb, compute_dtype=cd,
                          m_transposed=m_transposed),
        out_shape=(jax.ShapeDtypeStruct((B, C, HWp), cd),
                   jax.ShapeDtypeStruct((S, B, C, D), f32)),
        grid_spec=pltpu.PrefetchScalarGridSpec(
            num_scalar_prefetch=0,
            grid=(S, B, n_cb, n1s),
            in_specs=[
                pl.BlockSpec((1, Cb, D, T1), lambda s, b, cb, t: (b, cb, 0, s * n1s + t)),
                m_spec,
                pl.BlockSpec((D, D), lambda s, b, cb, t: (0, 0)),
                pl.BlockSpec((D, 1), lambda s, b, cb, t: (0, 0)),
                pl.BlockSpec((1, D), lambda s, b, cb, t: (0, 0)),
                pl.BlockSpec((1, 1), lambda s, b, cb, t: (0, 0)),
            ],
            out_specs=[
                pl.BlockSpec((1, Cb, T1), lambda s, b, cb, t: (b, cb, s * n1s + t)),
                pl.BlockSpec((1, 1, Cb, D), lambda s, b, cb, t: (s, b, cb, 0)),  # resident accum
            ],
            scratch_shapes=[pltpu.VMEM((Cb, T1), jnp.float32)],
        ),
        compiler_params=pltpu.CompilerParams(
            dimension_semantics=("parallel", "parallel", "parallel", "arbitrary"),
            vmem_limit_bytes=vmem1),
    )(x4d, M_in, w1_k, b1_k, w2_k, b2_k)

    d_feas = dfeas_parts.sum(axis=0)                    # [B, C, D] f32 (tiny)

    # ---- key / value hoisted out of the per-HW-tile loop (tiny [B, C, D] math) ---
    def convbn_relu_bd(w, b, act):
        return jax.nn.relu(jnp.einsum("oi,bid->bod", w, act) + b[None, :, None])

    wphi1, bphi1 = params["phi1"]
    wphi2, bphi2 = params["phi2"]
    wfd, bfd = params["fdown"]
    key_bd = convbn_relu_bd(wphi2, bphi2,
                            convbn_relu_bd(wphi1, bphi1, d_feas)).astype(cd)   # [B, K, D]
    value_bd = convbn_relu_bd(wfd, bfd, d_feas).astype(cd)                      # [B, K, D]

    # ---- phase-2 weights ----------------------------------------------------------
    names3 = ("psi1", "psi2", "fup")
    w3 = jnp.stack([params[n][0] for n in names3]).astype(cd)                # [3, C, C]
    b3 = jnp.stack([params[n][1] for n in names3]).astype(f32)[:, :, None]   # [3, C, 1]
    wfin, bfin = params["final"]                 # [128, 2C], [128]
    wfy_k = wfin[:, :C].astype(cd)               # acts on y
    wff_k = wfin[:, C:].astype(cd)               # acts on feats
    bfin_k = bfin.astype(f32)[:, None]
    wcls, bcls = params["cls"]                   # [D, 128], [D]
    wcls_k = wcls.astype(cd)
    bcls_k = bcls.astype(f32)[:, None]

    # ---- phase-2 tiling ------------------------------------------------------------
    col2 = 2 * (C * c_isz + D * o_isz) + 4 * (4 * C + 3 * D + 2 * 128)
    T2 = tile_hw2 if tile_hw2 is not None else _pick_tile(HWp, col2, budget_bytes=blk_budget)
    assert HWp % T2 == 0 and T2 % 128 == 0, (HWp, T2)
    n2 = HWp // T2
    if B * n2 < 2 and T2 % 256 == 0:             # keep both v7x TCs busy
        T2 //= 2
        n2 = HWp // T2

    need2 = (2 * T2 * (C * c_isz + D * o_isz)
             + 4 * c_isz * C * D
             + c_isz * (3 * C * C + 2 * 128 * C + 128 * D) + 4 * (3 * C + 128 + D)
             + 4 * (4 * C + 3 * D + 2 * 128) * T2)
    vmem2 = _vmem_limit(need2, limit_cap)

    out = pl.pallas_call(
        functools.partial(_attention_head_kernel, compute_dtype=cd),
        out_shape=jax.ShapeDtypeStruct((B, D, HWp), od),
        grid_spec=pltpu.PrefetchScalarGridSpec(
            num_scalar_prefetch=0,
            grid=(B, n2),
            in_specs=[
                pl.BlockSpec((1, C, T2), lambda b, t: (b, 0, t)),
                pl.BlockSpec((1, C, D), lambda b, t: (b, 0, 0)),
                pl.BlockSpec((1, C, D), lambda b, t: (b, 0, 0)),
                pl.BlockSpec((3, C, C), lambda b, t: (0, 0, 0)),
                pl.BlockSpec((3, C, 1), lambda b, t: (0, 0, 0)),
                pl.BlockSpec((128, C), lambda b, t: (0, 0)),
                pl.BlockSpec((128, C), lambda b, t: (0, 0)),
                pl.BlockSpec((128, 1), lambda b, t: (0, 0)),
                pl.BlockSpec((D, 128), lambda b, t: (0, 0)),
                pl.BlockSpec((D, 1), lambda b, t: (0, 0)),
            ],
            out_specs=pl.BlockSpec((1, D, T2), lambda b, t: (b, 0, t)),
        ),
        compiler_params=pltpu.CompilerParams(
            dimension_semantics=("parallel", "parallel"),
            vmem_limit_bytes=vmem2),
    )(feats, key_bd, value_bd, w3, b3, wfy_k, wff_k, bfin_k, wcls_k, bcls_k)

    if pad:
        out = out[:, :, :HW]
    # lane-dense [B, D, HW] -> [B, D, H, W] is a pure reshape (no transpose)
    return out.reshape(B, D, H, W)


# -----------------------------------------------------------------------------
# Deterministic parameter construction (conv weights + eval-mode BN, folded).
# -----------------------------------------------------------------------------
def fold_convbn(key, in_c, out_c, eps=1e-5):
    k1, k2, k3, k4, k5 = jax.random.split(key, 5)
    w = jax.random.normal(k1, (out_c, in_c), jnp.float32) * 0.2
    gamma = jax.random.uniform(k2, (out_c,), jnp.float32, minval=0.5, maxval=1.5)
    beta = jax.random.normal(k3, (out_c,), jnp.float32) * 0.1
    mu = jax.random.normal(k4, (out_c,), jnp.float32) * 0.1
    var = jax.random.uniform(k5, (out_c,), jnp.float32, minval=0.5, maxval=1.5)
    scale = gamma / jnp.sqrt(var + eps)
    return w * scale[:, None], beta - scale * mu


def make_params(key, d_num, c_num):
    keys = jax.random.split(key, 12)
    p = {}
    p["disp1"] = fold_convbn(keys[0], d_num, d_num)
    p["disp2"] = fold_convbn(keys[1], d_num, 1)
    p["psi1"] = fold_convbn(keys[2], c_num, c_num)
    p["psi2"] = fold_convbn(keys[3], c_num, c_num)
    p["phi1"] = fold_convbn(keys[4], c_num, c_num)
    p["phi2"] = fold_convbn(keys[5], c_num, c_num)
    p["fdown"] = fold_convbn(keys[6], c_num, c_num)
    p["fup"] = fold_convbn(keys[7], c_num, c_num)
    p["final"] = fold_convbn(keys[8], 2 * c_num, 128)
    wc = jax.random.normal(keys[9], (d_num, 128), jnp.float32) * 0.1
    bc = jax.random.normal(keys[10], (d_num,), jnp.float32) * 0.1
    p["cls"] = (wc, bc)
    return p


# -----------------------------------------------------------------------------
# Pure-JAX reference (mirrors the PyTorch forward, using the same folded params).
# -----------------------------------------------------------------------------
def ocr_reference(x, cost, params):
    B, C, D, H, W = x.shape
    cost = cost[:, 0]                                               # [B, D, H, W]
    M = jax.nn.softmax(cost.reshape(B, D, H * W), axis=2)

    xp = jnp.transpose(x, (0, 2, 1, 3, 4))                          # [B, D, C, H, W]
    w1, b1 = params["disp1"]
    w2, b2 = params["disp2"]
    h1 = jax.nn.relu(jnp.einsum("bdchw,ed->bechw", xp, w1)
                     + b1[None, :, None, None, None])
    feats = jax.nn.relu(jnp.einsum("bdchw,ed->bechw", h1, w2)
                        + b2[None, :, None, None, None])[:, 0]      # [B, C, H, W]

    x_flat = feats.reshape(B, C, H * W).transpose(0, 2, 1)          # [B, HW, C]
    d_feas = jnp.matmul(M, x_flat).transpose(0, 2, 1)[..., None]    # [B, C, D, 1]

    def conv1x1(t, w, b):
        return jnp.einsum("bchw,oc->bohw", t, w) + b[None, :, None, None]

    wpsi1, bpsi1 = params["psi1"]; wpsi2, bpsi2 = params["psi2"]
    wphi1, bphi1 = params["phi1"]; wphi2, bphi2 = params["phi2"]
    wfd, bfd = params["fdown"];    wfu, bfu = params["fup"]

    query = jax.nn.relu(conv1x1(jax.nn.relu(conv1x1(feats, wpsi1, bpsi1)), wpsi2, bpsi2))
    query = query.reshape(B, C, H * W).transpose(0, 2, 1)           # [B, HW, K]
    key = jax.nn.relu(conv1x1(jax.nn.relu(conv1x1(d_feas, wphi1, bphi1)), wphi2, bphi2))
    key = key.reshape(B, C, D)                                      # [B, K, D]
    value = jax.nn.relu(conv1x1(d_feas, wfd, bfd)).reshape(B, C, D).transpose(0, 2, 1)

    sim = jax.nn.softmax(jnp.matmul(query, key), axis=-1)           # [B, HW, D]
    context = jnp.matmul(sim, value).transpose(0, 2, 1).reshape(B, C, H, W)
    y = jax.nn.relu(conv1x1(context, wfu, bfu))

    wfin, bfin = params["final"]; wcls, bcls = params["cls"]
    z = jax.nn.relu(conv1x1(jnp.concatenate([y, feats], axis=1), wfin, bfin))
    return conv1x1(z, wcls, bcls)                                   # [B, D, H, W]


if __name__ == "__main__":
    base_key = jax.random.PRNGKey(0)

    def run_case(case_id, B, C, D, H, W, *, compute_dtype=jnp.float32,
                 out_dtype=None, rtol=5e-3, atol=5e-3, tile_hw1=None):
        kx, kc, kp = jax.random.split(jax.random.fold_in(base_key, case_id), 3)
        x = jax.random.normal(kx, (B, C, D, H, W), jnp.float32)
        cost = jax.random.normal(kc, (B, 1, D, H, W), jnp.float32)
        params = make_params(kp, D, C)
        ref = jax.block_until_ready(ocr_reference(x, cost, params))
        fn = jax.jit(functools.partial(ocr_pallas, params=params,
                                       compute_dtype=compute_dtype,
                                       out_dtype=out_dtype, tile_hw1=tile_hw1))
        out = jax.block_until_ready(fn(x, cost))
        assert out.shape == (B, D, H, W), (case_id, out.shape)
        out_f32 = out.astype(jnp.float32)
        err = float(jnp.max(jnp.abs(out_f32 - ref)))
        assert jnp.allclose(out_f32, ref, rtol=rtol, atol=atol), (case_id, err)

    # A: batch=2, c_num=4, d_num=8, 8x8 spatial (HW=64 -> padded to 128), f32.
    run_case(0, 2, 4, 8, 8, 8)
    # A-bf16: bf16 MXU operands + bf16 output; f32 accumulation / VPU math.
    run_case(1, 2, 4, 8, 8, 8, compute_dtype=jnp.bfloat16, out_dtype=jnp.bfloat16,
             rtol=1e-1, atol=1.5e-1)
    # B: large disparity count -> exercises the pre-transposed-M (D >= 128) path.
    run_case(2, 1, 4, 128, 8, 8, rtol=2e-2, atol=2e-2)
    # C: c_num=16 -> channel-blocked phase 1 (Cb=8); tile_hw1=128 -> HW split (S=2).
    run_case(3, 1, 16, 8, 16, 16, rtol=2e-2, atol=2e-2, tile_hw1=128)

    print("KERNEL_OK")
</pallas_src>

<mosaic_0001>
module attributes {stable_mosaic.version = 11 : i64} {
  func.func @_disp_dfeas_kernel(%arg0: i32, %arg1: i32, %arg2: i32, %arg3: i32, %arg4: memref<1x4x8x128xf32, #tpu.memory_space<vmem>>, %arg5: memref<1x8x128xf32, #tpu.memory_space<vmem>>, %arg6: memref<8x8xf32, #tpu.memory_space<vmem>>, %arg7: memref<8x1xf32, #tpu.memory_space<vmem>>, %arg8: memref<1x8xf32, #tpu.memory_space<vmem>>, %arg9: memref<1x1xf32, #tpu.memory_space<vmem>>, %arg10: memref<1x4x128xf32, #tpu.memory_space<vmem>>, %arg11: memref<1x1x4x8xf32, #tpu.memory_space<vmem>>, %arg12: memref<4x128xf32, #tpu.memory_space<vmem>>) attributes {dimension_semantics = [#tpu.dimension_semantics<parallel>, #tpu.dimension_semantics<parallel>, #tpu.dimension_semantics<parallel>, #tpu.dimension_semantics<arbitrary>], iteration_bounds = array<i64: 1, 2, 1, 1>, scalar_prefetch = 0 : i64, scratch_operands = 1 : i64, tpu.core_type = #tpu.core_type<tc>, window_params = [{transform_indices = @transform_0, window_bounds = array<i64: 1, 4, 8, 128>}, {transform_indices = @transform_1, window_bounds = array<i64: 1, 8, 128>}, {pipeline_mode = #tpu.pipeline_mode<synchronous>, transform_indices = @transform_2, window_bounds = array<i64: 8, 8>}, {pipeline_mode = #tpu.pipeline_mode<synchronous>, transform_indices = @transform_3, window_bounds = array<i64: 8, 1>}, {pipeline_mode = #tpu.pipeline_mode<synchronous>, transform_indices = @transform_4, window_bounds = array<i64: 1, 8>}, {pipeline_mode = #tpu.pipeline_mode<synchronous>, transform_indices = @transform_5, window_bounds = array<i64: 1, 1>}, {transform_indices = @transform_6, window_bounds = array<i64: 1, 4, 128>}, {transform_indices = @transform_7, window_bounds = array<i64: 1, 1, 4, 8>}]} {
    %c0_i32 = arith.constant 0 : i32
    %0 = arith.cmpi eq, %arg3, %c0_i32 : i32
    %1 = arith.extui %0 : i1 to i32
    %c0_i32_0 = arith.constant 0 : i32
    %2 = arith.cmpi ne, %1, %c0_i32_0 : i32
    scf.if %2 {
      %cst_61 = arith.constant 0.000000e+00 : f32
      %72 = vector.broadcast %cst_61 : f32 to vector<1x1x4x8xf32>
      %c0_62 = arith.constant 0 : index
      %c0_63 = arith.constant 0 : index
      %c0_64 = arith.constant 0 : index
      %c0_65 = arith.constant 0 : index
      %73 = vector.load %arg11[%c0_62, %c0_63, %c0_64, %c0_65] : memref<1x1x4x8xf32, #tpu.memory_space<vmem>>, vector<1x1x4x8xf32>
      tpu.vector_store %arg11[%c0_62, %c0_63, %c0_64, %c0_65], %72 {strides = array<i32>} : memref<1x1x4x8xf32, #tpu.memory_space<vmem>>, vector<1x1x4x8xf32>,
    } else {
    }
    %c0 = arith.constant 0 : index
    %c0_1 = arith.constant 0 : index
    %3 = vector.load %arg6[%c0, %c0_1] : memref<8x8xf32, #tpu.memory_space<vmem>>, vector<8x8xf32>
    %c0_2 = arith.constant 0 : index
    %c0_3 = arith.constant 0 : index
    %4 = vector.load %arg7[%c0_2, %c0_3] : memref<8x1xf32, #tpu.memory_space<vmem>>, vector<8x1xf32>
    %c0_4 = arith.constant 0 : index
    %c0_5 = arith.constant 0 : index
    %5 = vector.load %arg8[%c0_4, %c0_5] : memref<1x8xf32, #tpu.memory_space<vmem>>, vector<1x8xf32>
    %c0_6 = arith.constant 0 : index
    %c0_7 = arith.constant 0 : index
    %6 = vector.load %arg9[%c0_6, %c0_7] : memref<1x1xf32, #tpu.memory_space<vmem>>, vector<1x1xf32>
    %c0_8 = arith.constant 0 : index
    %c0_9 = arith.constant 0 : index
    %c0_10 = arith.constant 0 : index
    %c0_11 = arith.constant 0 : index
    %7 = vector.load %arg4[%c0_8, %c0_9, %c0_10, %c0_11] : memref<1x4x8x128xf32, #tpu.memory_space<vmem>>, vector<1x1x8x128xf32>
    %8 = vector.shape_cast %7 : vector<1x1x8x128xf32> to vector<8x128xf32>
    %cst = arith.constant dense<0.000000e+00> : vector<8x128xf32>
    %9 = tpu.matmul %3, %8, %cst {dimension_numbers = #tpu.dot_dimension_numbers<[1], [0], [0], [1], [0, 0, 1, 1], [], []>} : vector<8x8xf32>, vector<8x128xf32>, vector<8x128xf32> -> vector<8x128xf32>
    %10 = vector.broadcast %4 : vector<8x1xf32> to vector<8x128xf32>
    %11 = arith.addf %9, %10 : vector<8x128xf32>
    %cst_12 = arith.constant 0.000000e+00 : f32
    %12 = vector.broadcast %cst_12 : f32 to vector<8x128xf32>
    %13 = arith.maximumf %11, %12 : vector<8x128xf32>
    %cst_13 = arith.constant dense<0.000000e+00> : vector<1x128xf32>
    %14 = tpu.matmul %5, %13, %cst_13 {dimension_numbers = #tpu.dot_dimension_numbers<[1], [0], [0], [1], [0, 0, 1, 1], [], []>} : vector<1x8xf32>, vector<8x128xf32>, vector<1x128xf32> -> vector<1x128xf32>
    %15 = vector.broadcast %6 : vector<1x1xf32> to vector<1x128xf32>
    %16 = arith.addf %14, %15 : vector<1x128xf32>
    %cst_14 = arith.constant 0.000000e+00 : f32
    %17 = vector.broadcast %cst_14 : f32 to vector<1x128xf32>
    %18 = arith.maximumf %16, %17 : vector<1x128xf32>
    %c0_15 = arith.constant 0 : index
    %c0_16 = arith.constant 0 : index
    %19 = vector.load %arg12[%c0_15, %c0_16] : memref<4x128xf32, #tpu.memory_space<vmem>>, vector<1x128xf32>
    tpu.vector_store %arg12[%c0_15, %c0_16], %18 {strides = array<i32>} : memref<4x128xf32, #tpu.memory_space<vmem>>, vector<1x128xf32>,
    %c0_17 = arith.constant 0 : index
    %c1 = arith.constant 1 : index
    %c0_18 = arith.constant 0 : index
    %c0_19 = arith.constant 0 : index
    %20 = vector.load %arg4[%c0_17, %c1, %c0_18, %c0_19] : memref<1x4x8x128xf32, #tpu.memory_space<vmem>>, vector<1x1x8x128xf32>
    %21 = vector.shape_cast %20 : vector<1x1x8x128xf32> to vector<8x128xf32>
    %cst_20 = arith.constant dense<0.000000e+00> : vector<8x128xf32>
    %22 = tpu.matmul %3, %21, %cst_20 {dimension_numbers = #tpu.dot_dimension_numbers<[1], [0], [0], [1], [0, 0, 1, 1], [], []>} : vector<8x8xf32>, vector<8x128xf32>, vector<8x128xf32> -> vector<8x128xf32>
    %23 = vector.broadcast %4 : vector<8x1xf32> to vector<8x128xf32>
    %24 = arith.addf %22, %23 : vector<8x128xf32>
    %cst_21 = arith.constant 0.000000e+00 : f32
    %25 = vector.broadcast %cst_21 : f32 to vector<8x128xf32>
    %26 = arith.maximumf %24, %25 : vector<8x128xf32>
    %cst_22 = arith.constant dense<0.000000e+00> : vector<1x128xf32>
    %27 = tpu.matmul %5, %26, %cst_22 {dimension_numbers = #tpu.dot_dimension_numbers<[1], [0], [0], [1], [0, 0, 1, 1], [], []>} : vector<1x8xf32>, vector<8x128xf32>, vector<1x128xf32> -> vector<1x128xf32>
    %28 = vector.broadcast %6 : vector<1x1xf32> to vector<1x128xf32>
    %29 = arith.addf %27, %28 : vector<1x128xf32>
    %cst_23 = arith.constant 0.000000e+00 : f32
    %30 = vector.broadcast %cst_23 : f32 to vector<1x128xf32>
    %31 = arith.maximumf %29, %30 : vector<1x128xf32>
    %c1_24 = arith.constant 1 : index
    %c0_25 = arith.constant 0 : index
    %32 = vector.load %arg12[%c1_24, %c0_25] : memref<4x128xf32, #tpu.memory_space<vmem>>, vector<1x128xf32>
    tpu.vector_store %arg12[%c1_24, %c0_25], %31 {strides = array<i32>} : memref<4x128xf32, #tpu.memory_space<vmem>>, vector<1x128xf32>,
    %c0_26 = arith.constant 0 : index
    %c2 = arith.constant 2 : index
    %c0_27 = arith.constant 0 : index
    %c0_28 = arith.constant 0 : index
    %33 = vector.load %arg4[%c0_26, %c2, %c0_27, %c0_28] : memref<1x4x8x128xf32, #tpu.memory_space<vmem>>, vector<1x1x8x128xf32>
    %34 = vector.shape_cast %33 : vector<1x1x8x128xf32> to vector<8x128xf32>
    %cst_29 = arith.constant dense<0.000000e+00> : vector<8x128xf32>
    %35 = tpu.matmul %3, %34, %cst_29 {dimension_numbers = #tpu.dot_dimension_numbers<[1], [0], [0], [1], [0, 0, 1, 1], [], []>} : vector<8x8xf32>, vector<8x128xf32>, vector<8x128xf32> -> vector<8x128xf32>
    %36 = vector.broadcast %4 : vector<8x1xf32> to vector<8x128xf32>
    %37 = arith.addf %35, %36 : vector<8x128xf32>
    %cst_30 = arith.constant 0.000000e+00 : f32
    %38 = vector.broadcast %cst_30 : f32 to vector<8x128xf32>
    %39 = arith.maximumf %37, %38 : vector<8x128xf32>
    %cst_31 = arith.constant dense<0.000000e+00> : vector<1x128xf32>
    %40 = tpu.matmul %5, %39, %cst_31 {dimension_numbers = #tpu.dot_dimension_numbers<[1], [0], [0], [1], [0, 0, 1, 1], [], []>} : vector<1x8xf32>, vector<8x128xf32>, vector<1x128xf32> -> vector<1x128xf32>
    %41 = vector.broadcast %6 : vector<1x1xf32> to vector<1x128xf32>
    %42 = arith.addf %40, %41 : vector<1x128xf32>
    %cst_32 = arith.constant 0.000000e+00 : f32
    %43 = vector.broadcast %cst_32 : f32 to vector<1x128xf32>
    %44 = arith.maximumf %42, %43 : vector<1x128xf32>
    %c2_33 = arith.constant 2 : index
    %c0_34 = arith.constant 0 : index
    %45 = vector.load %arg12[%c2_33, %c0_34] : memref<4x128xf32, #tpu.memory_space<vmem>>, vector<1x128xf32>
    tpu.vector_store %arg12[%c2_33, %c0_34], %44 {strides = array<i32>} : memref<4x128xf32, #tpu.memory_space<vmem>>, vector<1x128xf32>,
    %c0_35 = arith.constant 0 : index
    %c3 = arith.constant 3 : index
    %c0_36 = arith.constant 0 : index
    %c0_37 = arith.constant 0 : index
    %46 = vector.load %arg4[%c0_35, %c3, %c0_36, %c0_37] : memref<1x4x8x128xf32, #tpu.memory_space<vmem>>, vector<1x1x8x128xf32>
    %47 = vector.shape_cast %46 : vector<1x1x8x128xf32> to vector<8x128xf32>
    %cst_38 = arith.constant dense<0.000000e+00> : vector<8x128xf32>
    %48 = tpu.matmul %3, %47, %cst_38 {dimension_numbers = #tpu.dot_dimension_numbers<[1], [0], [0], [1], [0, 0, 1, 1], [], []>} : vector<8x8xf32>, vector<8x128xf32>, vector<8x128xf32> -> vector<8x128xf32>
    %49 = vector.broadcast %4 : vector<8x1xf32> to vector<8x128xf32>
    %50 = arith.addf %48, %49 : vector<8x128xf32>
    %cst_39 = arith.constant 0.000000e+00 : f32
    %51 = vector.broadcast %cst_39 : f32 to vector<8x128xf32>
    %52 = arith.maximumf %50, %51 : vector<8x128xf32>
    %cst_40 = arith.constant dense<0.000000e+00> : vector<1x128xf32>
    %53 = tpu.matmul %5, %52, %cst_40 {dimension_numbers = #tpu.dot_dimension_numbers<[1], [0], [0], [1], [0, 0, 1, 1], [], []>} : vector<1x8xf32>, vector<8x128xf32>, vector<1x128xf32> -> vector<1x128xf32>
    %54 = vector.broadcast %6 : vector<1x1xf32> to vector<1x128xf32>
    %55 = arith.addf %53, %54 : vector<1x128xf32>
    %cst_41 = arith.constant 0.000000e+00 : f32
    %56 = vector.broadcast %cst_41 : f32 to vector<1x128xf32>
    %57 = arith.maximumf %55, %56 : vector<1x128xf32>
    %c3_42 = arith.constant 3 : index
    %c0_43 = arith.constant 0 : index
    %58 = vector.load %arg12[%c3_42, %c0_43] : memref<4x128xf32, #tpu.memory_space<vmem>>, vector<1x128xf32>
    tpu.vector_store %arg12[%c3_42, %c0_43], %57 {strides = array<i32>} : memref<4x128xf32, #tpu.memory_space<vmem>>, vector<1x128xf32>,
    %c0_44 = arith.constant 0 : index
    %c0_45 = arith.constant 0 : index
    %59 = vector.load %arg12[%c0_44, %c0_45] : memref<4x128xf32, #tpu.memory_space<vmem>>, vector<4x128xf32>
    %c0_46 = arith.constant 0 : index
    %c0_47 = arith.constant 0 : index
    %c0_48 = arith.constant 0 : index
    %60 = vector.load %arg10[%c0_46, %c0_47, %c0_48] : memref<1x4x128xf32, #tpu.memory_space<vmem>>, vector<1x4x128xf32>
    %61 = vector.shape_cast %60 : vector<1x4x128xf32> to vector<4x128xf32>
    %62 = vector.shape_cast %59 : vector<4x128xf32> to vector<1x4x128xf32>
    tpu.vector_store %arg10[%c0_46, %c0_47, %c0_48], %62 {strides = array<i32>} : memref<1x4x128xf32, #tpu.memory_space<vmem>>, vector<1x4x128xf32>,
    %c0_49 = arith.constant 0 : index
    %c0_50 = arith.constant 0 : index
    %c0_51 = arith.constant 0 : index
    %63 = vector.load %arg5[%c0_49, %c0_50, %c0_51] : memref<1x8x128xf32, #tpu.memory_space<vmem>>, vector<1x8x128xf32>
    %64 = vector.shape_cast %63 : vector<1x8x128xf32> to vector<8x128xf32>
    %cst_52 = arith.constant dense<0.000000e+00> : vector<4x8xf32>
    %65 = tpu.matmul %59, %64, %cst_52 {dimension_numbers = #tpu.dot_dimension_numbers<[1], [1], [0], [0], [0, 0, 1, 0], [], []>} : vector<4x128xf32>, vector<8x128xf32>, vector<4x8xf32> -> vector<4x8xf32>
    %c0_53 = arith.constant 0 : index
    %c0_54 = arith.constant 0 : index
    %c0_55 = arith.constant 0 : index
    %c0_56 = arith.constant 0 : index
    %66 = vector.load %arg11[%c0_53, %c0_54, %c0_55, %c0_56] : memref<1x1x4x8xf32, #tpu.memory_space<vmem>>, vector<1x1x4x8xf32>
    %67 = vector.shape_cast %66 : vector<1x1x4x8xf32> to vector<4x8xf32>
    %68 = arith.addf %67, %65 : vector<4x8xf32>
    %c0_57 = arith.constant 0 : index
    %c0_58 = arith.constant 0 : index
    %c0_59 = arith.constant 0 : index
    %c0_60 = arith.constant 0 : index
    %69 = vector.load %arg11[%c0_57, %c0_58, %c0_59, %c0_60] : memref<1x1x4x8xf32, #tpu.memory_space<vmem>>, vector<1x1x4x8xf32>
    %70 = vector.shape_cast %69 : vector<1x1x4x8xf32> to vector<4x8xf32>
    %71 = vector.shape_cast %68 : vector<4x8xf32> to vector<1x1x4x8xf32>
    tpu.vector_store %arg11[%c0_57, %c0_58, %c0_59, %c0_60], %71 {strides = array<i32>} : memref<1x1x4x8xf32, #tpu.memory_space<vmem>>, vector<1x1x4x8xf32>,
    return
  }
  func.func @transform_0(%arg0: i32, %arg1: i32, %arg2: i32, %arg3: i32) -> (i32, i32, i32, i32) {
    %c1_i32 = arith.constant 1 : i32
    %0 = arith.muli %arg0, %c1_i32 : i32
    %1 = arith.addi %0, %arg3 : i32
    %c0_i32 = arith.constant 0 : i32
    %c0_i32_0 = arith.constant 0 : i32
    return %arg1, %arg2, %c0_i32, %1 : i32, i32, i32, i32
  }
  func.func @transform_1(%arg0: i32, %arg1: i32, %arg2: i32, %arg3: i32) -> (i32, i32, i32) {
    %c1_i32 = arith.constant 1 : i32
    %0 = arith.muli %arg0, %c1_i32 : i32
    %1 = arith.addi %0, %arg3 : i32
    %c0_i32 = arith.constant 0 : i32
    %c0_i32_0 = arith.constant 0 : i32
    return %arg1, %c0_i32, %1 : i32, i32, i32
  }
  func.func @transform_2(%arg0: i32, %arg1: i32, %arg2: i32, %arg3: i32) -> (i32, i32) {
    %c0_i32 = arith.constant 0 : i32
    %c0_i32_0 = arith.constant 0 : i32
    %c0_i32_1 = arith.constant 0 : i32
    return %c0_i32, %c0_i32_0 : i32, i32
  }
  func.func @transform_3(%arg0: i32, %arg1: i32, %arg2: i32, %arg3: i32) -> (i32, i32) {
    %c0_i32 = arith.constant 0 : i32
    %c0_i32_0 = arith.constant 0 : i32
    %c0_i32_1 = arith.constant 0 : i32
    return %c0_i32, %c0_i32_0 : i32, i32
  }
  func.func @transform_4(%arg0: i32, %arg1: i32, %arg2: i32, %arg3: i32) -> (i32, i32) {
    %c0_i32 = arith.constant 0 : i32
    %c0_i32_0 = arith.constant 0 : i32
    %c0_i32_1 = arith.constant 0 : i32
    return %c0_i32, %c0_i32_0 : i32, i32
  }
  func.func @transform_5(%arg0: i32, %arg1: i32, %arg2: i32, %arg3: i32) -> (i32, i32) {
    %c0_i32 = arith.constant 0 : i32
    %c0_i32_0 = arith.constant 0 : i32
    %c0_i32_1 = arith.constant 0 : i32
    return %c0_i32, %c0_i32_0 : i32, i32
  }
  func.func @transform_6(%arg0: i32, %arg1: i32, %arg2: i32, %arg3: i32) -> (i32, i32, i32) {
    %c1_i32 = arith.constant 1 : i32
    %0 = arith.muli %arg0, %c1_i32 : i32
    %1 = arith.addi %0, %arg3 : i32
    %c0_i32 = arith.constant 0 : i32
    return %arg1, %arg2, %1 : i32, i32, i32
  }
  func.func @transform_7(%arg0: i32, %arg1: i32, %arg2: i32, %arg3: i32) -> (i32, i32, i32, i32) {
    %c0_i32 = arith.constant 0 : i32
    %c0_i32_0 = arith.constant 0 : i32
    return %arg0, %arg1, %arg2, %c0_i32 : i32, i32, i32, i32
  }
}

module attributes {stable_mosaic.version = 11 : i64} {
  func.func @_attention_head_kernel(%arg0: i32, %arg1: i32, %arg2: memref<1x4x128xf32, #tpu.memory_space<vmem>>, %arg3: memref<1x4x8xf32, #tpu.memory_space<vmem>>, %arg4: memref<1x4x8xf32, #tpu.memory_space<vmem>>, %arg5: memref<3x4x4xf32, #tpu.memory_space<vmem>>, %arg6: memref<3x4x1xf32, #tpu.memory_space<vmem>>, %arg7: memref<128x4xf32, #tpu.memory_space<vmem>>, %arg8: memref<128x4xf32, #tpu.memory_space<vmem>>, %arg9: memref<128x1xf32, #tpu.memory_space<vmem>>, %arg10: memref<8x128xf32, #tpu.memory_space<vmem>>, %arg11: memref<8x1xf32, #tpu.memory_space<vmem>>, %arg12: memref<1x8x128xf32, #tpu.memory_space<vmem>>) attributes {dimension_semantics = [#tpu.dimension_semantics<parallel>, #tpu.dimension_semantics<parallel>], iteration_bounds = array<i64: 2, 1>, scalar_prefetch = 0 : i64, scratch_operands = 0 : i64, tpu.core_type = #tpu.core_type<tc>, window_params = [{transform_indices = @transform_0, window_bounds = array<i64: 1, 4, 128>}, {transform_indices = @transform_1, window_bounds = array<i64: 1, 4, 8>}, {transform_indices = @transform_2, window_bounds = array<i64: 1, 4, 8>}, {pipeline_mode = #tpu.pipeline_mode<synchronous>, transform_indices = @transform_3, window_bounds = array<i64: 3, 4, 4>}, {pipeline_mode = #tpu.pipeline_mode<synchronous>, transform_indices = @transform_4, window_bounds = array<i64: 3, 4, 1>}, {pipeline_mode = #tpu.pipeline_mode<synchronous>, transform_indices = @transform_5, window_bounds = array<i64: 128, 4>}, {pipeline_mode = #tpu.pipeline_mode<synchronous>, transform_indices = @transform_6, window_bounds = array<i64: 128, 4>}, {pipeline_mode = #tpu.pipeline_mode<synchronous>, transform_indices = @transform_7, window_bounds = array<i64: 128, 1>}, {pipeline_mode = #tpu.pipeline_mode<synchronous>, transform_indices = @transform_8, window_bounds = array<i64: 8, 128>}, {pipeline_mode = #tpu.pipeline_mode<synchronous>, transform_indices = @transform_9, window_bounds = array<i64: 8, 1>}, {transform_indices = @transform_10, window_bounds = array<i64: 1, 8, 128>}]} {
    %c0 = arith.constant 0 : index
    %c0_0 = arith.constant 0 : index
    %c0_1 = arith.constant 0 : index
    %0 = vector.load %arg2[%c0, %c0_0, %c0_1] : memref<1x4x128xf32, #tpu.memory_space<vmem>>, vector<1x4x128xf32>
    %1 = vector.shape_cast %0 : vector<1x4x128xf32> to vector<4x128xf32>
    %c0_2 = arith.constant 0 : index
    %c0_3 = arith.constant 0 : index
    %c0_4 = arith.constant 0 : index
    %2 = vector.load %arg3[%c0_2, %c0_3, %c0_4] : memref<1x4x8xf32, #tpu.memory_space<vmem>>, vector<1x4x8xf32>
    %3 = vector.shape_cast %2 : vector<1x4x8xf32> to vector<4x8xf32>
    %c0_5 = arith.constant 0 : index
    %c0_6 = arith.constant 0 : index
    %c0_7 = arith.constant 0 : index
    %4 = vector.load %arg4[%c0_5, %c0_6, %c0_7] : memref<1x4x8xf32, #tpu.memory_space<vmem>>, vector<1x4x8xf32>
    %5 = vector.shape_cast %4 : vector<1x4x8xf32> to vector<4x8xf32>
    %c0_8 = arith.constant 0 : index
    %c0_9 = arith.constant 0 : index
    %c0_10 = arith.constant 0 : index
    %6 = vector.load %arg5[%c0_8, %c0_9, %c0_10] : memref<3x4x4xf32, #tpu.memory_space<vmem>>, vector<1x4x4xf32>
    %7 = vector.shape_cast %6 : vector<1x4x4xf32> to vector<4x4xf32>
    %c0_11 = arith.constant 0 : index
    %c0_12 = arith.constant 0 : index
    %c0_13 = arith.constant 0 : index
    %8 = vector.load %arg6[%c0_11, %c0_12, %c0_13] : memref<3x4x1xf32, #tpu.memory_space<vmem>>, vector<1x4x1xf32>
    %9 = vector.shape_cast %8 : vector<1x4x1xf32> to vector<4x1xf32>
    %cst = arith.constant dense<0.000000e+00> : vector<4x128xf32>
    %10 = tpu.matmul %7, %1, %cst {dimension_numbers = #tpu.dot_dimension_numbers<[1], [0], [0], [1], [0, 0, 1, 1], [], []>} : vector<4x4xf32>, vector<4x128xf32>, vector<4x128xf32> -> vector<4x128xf32>
    %11 = vector.broadcast %9 : vector<4x1xf32> to vector<4x128xf32>
    %12 = arith.addf %10, %11 : vector<4x128xf32>
    %cst_14 = arith.constant 0.000000e+00 : f32
    %13 = vector.broadcast %cst_14 : f32 to vector<4x128xf32>
    %14 = arith.maximumf %12, %13 : vector<4x128xf32>
    %c1 = arith.constant 1 : index
    %c0_15 = arith.constant 0 : index
    %c0_16 = arith.constant 0 : index
    %15 = vector.load %arg5[%c1, %c0_15, %c0_16] : memref<3x4x4xf32, #tpu.memory_space<vmem>>, vector<1x4x4xf32>
    %16 = vector.shape_cast %15 : vector<1x4x4xf32> to vector<4x4xf32>
    %c1_17 = arith.constant 1 : index
    %c0_18 = arith.constant 0 : index
    %c0_19 = arith.constant 0 : index
    %17 = vector.load %arg6[%c1_17, %c0_18, %c0_19] : memref<3x4x1xf32, #tpu.memory_space<vmem>>, vector<1x4x1xf32>
    %18 = vector.shape_cast %17 : vector<1x4x1xf32> to vector<4x1xf32>
    %cst_20 = arith.constant dense<0.000000e+00> : vector<4x128xf32>
    %19 = tpu.matmul %16, %14, %cst_20 {dimension_numbers = #tpu.dot_dimension_numbers<[1], [0], [0], [1], [0, 0, 1, 1], [], []>} : vector<4x4xf32>, vector<4x128xf32>, vector<4x128xf32> -> vector<4x128xf32>
    %20 = vector.broadcast %18 : vector<4x1xf32> to vector<4x128xf32>
    %21 = arith.addf %19, %20 : vector<4x128xf32>
    %cst_21 = arith.constant 0.000000e+00 : f32
    %22 = vector.broadcast %cst_21 : f32 to vector<4x128xf32>
    %23 = arith.maximumf %21, %22 : vector<4x128xf32>
    %cst_22 = arith.constant dense<0.000000e+00> : vector<8x128xf32>
    %24 = tpu.matmul %3, %23, %cst_22 {dimension_numbers = #tpu.dot_dimension_numbers<[0], [0], [1], [1], [0, 1, 1, 1], [], []>} : vector<4x8xf32>, vector<4x128xf32>, vector<8x128xf32> -> vector<8x128xf32>
    %cst_23 = arith.constant dense<0xFF800000> : vector<128xf32>
    %25 = vector.multi_reduction <maximumf>, %24, %cst_23 [0] : vector<8x128xf32> to vector<128xf32>
    %26 = vector.shape_cast %25 : vector<128xf32> to vector<1x128xf32>
    %27 = vector.broadcast %26 : vector<1x128xf32> to vector<8x128xf32>
    %28 = arith.subf %24, %27 : vector<8x128xf32>
    %29 = math.exp %28 : vector<8x128xf32>
    %cst_24 = arith.constant dense<0.000000e+00> : vector<128xf32>
    %30 = vector.multi_reduction <add>, %29, %cst_24 [0] : vector<8x128xf32> to vector<128xf32>
    %31 = vector.shape_cast %30 : vector<128xf32> to vector<1x128xf32>
    %32 = tpu.reciprocal %31 {approx = true} : vector<1x128xf32> -> vector<1x128xf32>
    %33 = vector.broadcast %32 : vector<1x128xf32> to vector<8x128xf32>
    %34 = arith.mulf %29, %33 : vector<8x128xf32>
    %cst_25 = arith.constant dense<0.000000e+00> : vector<4x128xf32>
    %35 = tpu.matmul %5, %34, %cst_25 {dimension_numbers = #tpu.dot_dimension_numbers<[1], [0], [0], [1], [0, 0, 1, 1], [], []>} : vector<4x8xf32>, vector<8x128xf32>, vector<4x128xf32> -> vector<4x128xf32>
    %c2 = arith.constant 2 : index
    %c0_26 = arith.constant 0 : index
    %c0_27 = arith.constant 0 : index
    %36 = vector.load %arg5[%c2, %c0_26, %c0_27] : memref<3x4x4xf32, #tpu.memory_space<vmem>>, vector<1x4x4xf32>
    %37 = vector.shape_cast %36 : vector<1x4x4xf32> to vector<4x4xf32>
    %c2_28 = arith.constant 2 : index
    %c0_29 = arith.constant 0 : index
    %c0_30 = arith.constant 0 : index
    %38 = vector.load %arg6[%c2_28, %c0_29, %c0_30] : memref<3x4x1xf32, #tpu.memory_space<vmem>>, vector<1x4x1xf32>
    %39 = vector.shape_cast %38 : vector<1x4x1xf32> to vector<4x1xf32>
    %cst_31 = arith.constant dense<0.000000e+00> : vector<4x128xf32>
    %40 = tpu.matmul %37, %35, %cst_31 {dimension_numbers = #tpu.dot_dimension_numbers<[1], [0], [0], [1], [0, 0, 1, 1], [], []>} : vector<4x4xf32>, vector<4x128xf32>, vector<4x128xf32> -> vector<4x128xf32>
    %41 = vector.broadcast %39 : vector<4x1xf32> to vector<4x128xf32>
    %42 = arith.addf %40, %41 : vector<4x128xf32>
    %cst_32 = arith.constant 0.000000e+00 : f32
    %43 = vector.broadcast %cst_32 : f32 to vector<4x128xf32>
    %44 = arith.maximumf %42, %43 : vector<4x128xf32>
    %c0_33 = arith.constant 0 : index
    %c0_34 = arith.constant 0 : index
    %45 = vector.load %arg7[%c0_33, %c0_34] : memref<128x4xf32, #tpu.memory_space<vmem>>, vector<128x4xf32>
    %cst_35 = arith.constant dense<0.000000e+00> : vector<128x128xf32>
    %46 = tpu.matmul %45, %44, %cst_35 {dimension_numbers = #tpu.dot_dimension_numbers<[1], [0], [0], [1], [0, 0, 1, 1], [], []>} : vector<128x4xf32>, vector<4x128xf32>, vector<128x128xf32> -> vector<128x128xf32>
    %c0_36 = arith.constant 0 : index
    %c0_37 = arith.constant 0 : index
    %47 = vector.load %arg8[%c0_36, %c0_37] : memref<128x4xf32, #tpu.memory_space<vmem>>, vector<128x4xf32>
    %cst_38 = arith.constant dense<0.000000e+00> : vector<128x128xf32>
    %48 = tpu.matmul %47, %1, %cst_38 {dimension_numbers = #tpu.dot_dimension_numbers<[1], [0], [0], [1], [0, 0, 1, 1], [], []>} : vector<128x4xf32>, vector<4x128xf32>, vector<128x128xf32> -> vector<128x128xf32>
    %49 = arith.addf %46, %48 : vector<128x128xf32>
    %c0_39 = arith.constant 0 : index
    %c0_40 = arith.constant 0 : index
    %50 = vector.load %arg9[%c0_39, %c0_40] : memref<128x1xf32, #tpu.memory_space<vmem>>, vector<128x1xf32>
    %51 = vector.broadcast %50 : vector<128x1xf32> to vector<128x128xf32>
    %52 = arith.addf %49, %51 : vector<128x128xf32>
    %cst_41 = arith.constant 0.000000e+00 : f32
    %53 = vector.broadcast %cst_41 : f32 to vector<128x128xf32>
    %54 = arith.maximumf %52, %53 : vector<128x128xf32>
    %c0_42 = arith.constant 0 : index
    %c0_43 = arith.constant 0 : index
    %55 = vector.load %arg10[%c0_42, %c0_43] : memref<8x128xf32, #tpu.memory_space<vmem>>, vector<8x128xf32>
    %cst_44 = arith.constant dense<0.000000e+00> : vector<8x128xf32>
    %56 = tpu.matmul %55, %54, %cst_44 {dimension_numbers = #tpu.dot_dimension_numbers<[1], [0], [0], [1], [0, 0, 1, 1], [], []>} : vector<8x128xf32>, vector<128x128xf32>, vector<8x128xf32> -> vector<8x128xf32>
    %c0_45 = arith.constant 0 : index
    %c0_46 = arith.constant 0 : index
    %57 = vector.load %arg11[%c0_45, %c0_46] : memref<8x1xf32, #tpu.memory_space<vmem>>, vector<8x1xf32>
    %58 = vector.broadcast %57 : vector<8x1xf32> to vector<8x128xf32>
    %59 = arith.addf %56, %58 : vector<8x128xf32>
    %c0_47 = arith.constant 0 : index
    %c0_48 = arith.constant 0 : index
    %c0_49 = arith.constant 0 : index
    %60 = vector.load %arg12[%c0_47, %c0_48, %c0_49] : memref<1x8x128xf32, #tpu.memory_space<vmem>>, vector<1x8x128xf32>
    %61 = vector.shape_cast %60 : vector<1x8x128xf32> to vector<8x128xf32>
    %62 = vector.shape_cast %59 : vector<8x128xf32> to vector<1x8x128xf32>
    tpu.vector_store %arg12[%c0_47, %c0_48, %c0_49], %62 {strides = array<i32>} : memref<1x8x128xf32, #tpu.memory_space<vmem>>, vector<1x8x128xf32>,
    return
  }
  func.func @transform_0(%arg0: i32, %arg1: i32) -> (i32, i32, i32) {
    %c0_i32 = arith.constant 0 : i32
    %c0_i32_0 = arith.constant 0 : i32
    return %arg0, %c0_i32, %arg1 : i32, i32, i32
  }
  func.func @transform_1(%arg0: i32, %arg1: i32) -> (i32, i32, i32) {
    %c0_i32 = arith.constant 0 : i32
    %c0_i32_0 = arith.constant 0 : i32
    %c0_i32_1 = arith.constant 0 : i32
    return %arg0, %c0_i32, %c0_i32_0 : i32, i32, i32
  }
  func.func @transform_2(%arg0: i32, %arg1: i32) -> (i32, i32, i32) {
    %c0_i32 = arith.constant 0 : i32
    %c0_i32_0 = arith.constant 0 : i32
    %c0_i32_1 = arith.constant 0 : i32
    return %arg0, %c0_i32, %c0_i32_0 : i32, i32, i32
  }
  func.func @transform_3(%arg0: i32, %arg1: i32) -> (i32, i32, i32) {
    %c0_i32 = arith.constant 0 : i32
    %c0_i32_0 = arith.constant 0 : i32
    %c0_i32_1 = arith.constant 0 : i32
    %c0_i32_2 = arith.constant 0 : i32
    return %c0_i32, %c0_i32_0, %c0_i32_1 : i32, i32, i32
  }
  func.func @transform_4(%arg0: i32, %arg1: i32) -> (i32, i32, i32) {
    %c0_i32 = arith.constant 0 : i32
    %c0_i32_0 = arith.constant 0 : i32
    %c0_i32_1 = arith.constant 0 : i32
    %c0_i32_2 = arith.constant 0 : i32
    return %c0_i32, %c0_i32_0, %c0_i32_1 : i32, i32, i32
  }
  func.func @transform_5(%arg0: i32, %arg1: i32) -> (i32, i32) {
    %c0_i32 = arith.constant 0 : i32
    %c0_i32_0 = arith.constant 0 : i32
    %c0_i32_1 = arith.constant 0 : i32
    return %c0_i32, %c0_i32_0 : i32, i32
  }
  func.func @transform_6(%arg0: i32, %arg1: i32) -> (i32, i32) {
    %c0_i32 = arith.constant 0 : i32
    %c0_i32_0 = arith.constant 0 : i32
    %c0_i32_1 = arith.constant 0 : i32
    return %c0_i32, %c0_i32_0 : i32, i32
  }
  func.func @transform_7(%arg0: i32, %arg1: i32) -> (i32, i32) {
    %c0_i32 = arith.constant 0 : i32
    %c0_i32_0 = arith.constant 0 : i32
    %c0_i32_1 = arith.constant 0 : i32
    return %c0_i32, %c0_i32_0 : i32, i32
  }
  func.func @transform_8(%arg0: i32, %arg1: i32) -> (i32, i32) {
    %c0_i32 = arith.constant 0 : i32
    %c0_i32_0 = arith.constant 0 : i32
    %c0_i32_1 = arith.constant 0 : i32
    return %c0_i32, %c0_i32_0 : i32, i32
  }
  func.func @transform_9(%arg0: i32, %arg1: i32) -> (i32, i32) {
    %c0_i32 = arith.constant 0 : i32
    %c0_i32_0 = arith.constant 0 : i32
    %c0_i32_1 = arith.constant 0 : i32
    return %c0_i32, %c0_i32_0 : i32, i32
  }
  func.func @transform_10(%arg0: i32, %arg1: i32) -> (i32, i32, i32) {
    %c0_i32 = arith.constant 0 : i32
    %c0_i32_0 = arith.constant 0 : i32
    return %arg0, %c0_i32, %arg1 : i32, i32, i32
  }
}

</mosaic_0001>

<llo_original>
// kernel: ocr_pallas.2
$region0: #{ocr_pallas.2}
  #allocation0 [shape = 'u32[]', space=smem, size = 0x4, offset = 0x4, fixed_abs, tag = 'smem constant byte address 0x4 - core index']
  #allocation1 [shape = 'u32[72,128]{1,0:T(1,128)}', space=vmem, size = 0x9000, scoped, tag = 'internal scratch']
  #allocation2 [shape = 'f32[4,128]{1,0:T(4,128)}', space=vmem, size = 0x800, scoped, tag = 'scratch operand']
  #allocation3 [shape = 'f32[1,1]{1,0:T(1,128)S(1)}', space=vmem, size = 0x200, scoped, tag = 'scoped memory for ocr_pallas.2']
  %s0 = inlined_call_operand.vmem [shape: f32[2,4,8,128], index: 0, kind: input, shape index: {}]
  %s1 = inlined_call_operand.vmem [shape: f32[2,8,128], index: 1, kind: input, shape index: {}]
  %s2 = inlined_call_operand.vmem [shape: f32[8,8], index: 2, kind: input, shape index: {}]
  %s3 = inlined_call_operand.vmem [shape: f32[8,1], index: 3, kind: input, shape index: {}]
  %s4 = inlined_call_operand.vmem [shape: f32[1,8], index: 4, kind: input, shape index: {}]
  %s5 = inlined_call_operand.<no memory space> [shape: f32[1,1], index: 5, kind: input, shape index: {}]
  %s6 = inlined_call_operand.vmem [shape: f32[2,4,128], index: 6, kind: output, shape index: {0}]
  %s7 = inlined_call_operand.vmem [shape: f32[1,2,4,8], index: 7, kind: output, shape index: {1}]
  %8 = xla_tuple %s6, %s7
  %s9 = sld [smem:[#allocation0]]
  $region69: #{ocr_pallas.2} parent=0
    _
  %s11 = ssub.s32 1, %s9
  %s12 = scalar_select 0, %s11, %s9
  %v13 = vstv %s5
  %14 = vst [vmem:[#allocation3] sm:$0x1] %v13
  loop: start=0, step=1, limit=4
  $region2: #{ocr_pallas.2} parent=0 // loop_pre_header
    _
  $region3: #{ocr_pallas.2} parent=0 // loop_header
    %s16 = sphi 0, %s20
    %p17 = scmp.ge.s32.totalorder %s16, 4
    %s23 = sphi 0, %s49
    %s24 = sphi 0, %s45
    %s25 = sphi 0, %s41
    %s26 = sphi 0, %s37
    %s27 = sphi 0, %s23
    %s28 = sphi 0, %s24
    %s29 = sphi 0, %s25
    %s30 = sphi 0, %s26
    %s31 = sphi 0, %s27
    %s32 = sphi 0, %s28
    %s33 = sphi 0, %s29
    %s34 = sphi 0, %s30
    %s58 = sphi 0, %s60
    %s61 = sphi 0, %s58
    %s62 = sphi 0, %s61
    %s78 = sphi 0, %s62
    %s88 = sphi 0, %s90
    %s91 = sphi 0, %s88
    %s92 = sphi 0, %s91
    %s108 = sphi 0, %s92
    %s112 = sphi 0, %s112
    %s114 = sphi 0, %s112
    %s115 = sphi 0, %s114
    %s129 = sphi 0, %s115
    %s133 = sphi 0, %s133
    %s135 = sphi 0, %s133
    %s136 = sphi 0, %s135
    %s150 = sphi 0, %s136
    %s154 = sphi 0, %s154
    %s156 = sphi 0, %s154
    %s157 = sphi 0, %s156
    %s171 = sphi 0, %s157
    %s175 = sphi 0, %s175
    %s177 = sphi 0, %s175
    %s178 = sphi 0, %s177
    %s192 = sphi 0, %s178
    %s204 = sphi 0, %s206
    %s207 = sphi 0, %s204
    %s208 = sphi 0, %s207
    %s224 = sphi 0, %s208
    %s234 = sphi 0, %s236
    %s237 = sphi 0, %s234
    %s238 = sphi 0, %s237
    %s254 = sphi 0, %s238
  $region4: #{ocr_pallas.2} parent=0 // loop_header_branch
    %19 = sbr.rel (%p17) target = $region8
  $region5: #{ocr_pallas.2} parent=0 // loop_body
    %s21 = ssub.s32 %s16, 1
    %s22 = ssub.s32 %s16, 2
    %s35 = sadd.s32 1, %s26
    %p36 = scmp.ge.s32.totalorder %s35, 1
    %s37 = scalar_select %p36, 0, %s35
    %s38 = sadd.s32 1, %s25
    %s39 = scalar_select %p36, %s38, %s25
    %p40 = scmp.ge.s32.totalorder %s39, 1
    %s41 = scalar_select %p40, 0, %s39
    %s42 = sadd.s32 1, %s24
    %s43 = scalar_select %p40, %s42, %s24
    %p44 = scmp.ge.s32.totalorder %s43, 2
    %s45 = scalar_select %p44, 0, %s43
    %s46 = sadd.s32 1, %s23
    %s47 = scalar_select %p44, %s46, %s23
    %p48 = scmp.ge.s32.totalorder %s47, 1
    %s49 = scalar_select %p48, 0, %s47
    %s50 = sadd.s32 %s23, %s26
    %s51 = sadd.s32 %s49, %s37
    %s52 = ssub.s32 %s24, %s45
    %s53 = ssub.s32 %s25, %s41
    %s54 = sor.u32 %s52, %s53
    %s55 = ssub.s32 %s50, %s51
    %s56 = sor.u32 %s54, %s55
    %p57 = scmp.eq.s32.totalorder %s56, 0
    %s59 = sadd.s32 %s58, 1
    %s60 = scalar_select %p57, %s58, %s59
    %p63 = pneg %p57
    %p64 = scmp.eq.s32.totalorder %s16, 1
    %p65 = por %p63, %p64
    %p66 = scmp.ne.s32.totalorder %s58, %s61
    %p67 = scmp.eq.s32.totalorder %s16, 0
    %p68 = por %p66, %p67
    %p69 = scmp.ne.s32.totalorder %s58, %s61
    %p70 = scmp.eq.s32.totalorder %s21, 1
    %p71 = por %p69, %p70
    %p72 = scmp.ne.s32.totalorder %s61, %s62
    %p73 = scmp.eq.s32.totalorder %s21, 0
    %p74 = por %p72, %p73
    %p75 = scmp.ne.s32.totalorder %s61, %s62
    %p76 = scmp.eq.s32.totalorder %s22, 1
    %p77 = por %p75, %p76
    %p79 = scmp.ne.s32.totalorder %s62, %s78
    %p80 = scmp.eq.s32.totalorder %s22, 0
    %p81 = por %p79, %p80
    %s82 = sadd.s32 %s23, %s26
    %s83 = sadd.s32 %s49, %s37
    %s84 = ssub.s32 %s24, %s45
    %s85 = ssub.s32 %s82, %s83
    %s86 = sor.u32 %s84, %s85
    %p87 = scmp.eq.s32.totalorder %s86, 0
    %s89 = sadd.s32 %s88, 1
    %s90 = scalar_select %p87, %s88, %s89
    %p93 = pneg %p87
    %p94 = scmp.eq.s32.totalorder %s16, 1
    %p95 = por %p93, %p94
    %p96 = scmp.ne.s32.totalorder %s88, %s91
    %p97 = scmp.eq.s32.totalorder %s16, 0
    %p98 = por %p96, %p97
    %p99 = scmp.ne.s32.totalorder %s88, %s91
    %p100 = scmp.eq.s32.totalorder %s21, 1
    %p101 = por %p99, %p100
    %p102 = scmp.ne.s32.totalorder %s91, %s92
    %p103 = scmp.eq.s32.totalorder %s21, 0
    %p104 = por %p102, %p103
    %p105 = scmp.ne.s32.totalorder %s91, %s92
    %p106 = scmp.eq.s32.totalorder %s22, 1
    %p107 = por %p105, %p106
    %p109 = scmp.ne.s32.totalorder %s92, %s108
    %p110 = scmp.eq.s32.totalorder %s22, 0
    %p111 = por %p109, %p110
    %s113 = sadd.s32 %s112, 1
    %p116 = scmp.eq.s32.totalorder %s16, 1
    %p117 = scmp.ne.s32.totalorder %s112, %s114
    %p118 = scmp.eq.s32.totalorder %s16, 0
    %p119 = por %p117, %p118
    %p120 = scmp.ne.s32.totalorder %s112, %s114
    %p121 = scmp.eq.s32.totalorder %s21, 1
    %p122 = por %p120, %p121
    %p123 = scmp.ne.s32.totalorder %s114, %s115
    %p124 = scmp.eq.s32.totalorder %s21, 0
    %p125 = por %p123, %p124
    %p126 = scmp.ne.s32.totalorder %s114, %s115
    %p127 = scmp.eq.s32.totalorder %s22, 1
    %p128 = por %p126, %p127
    %p130 = scmp.ne.s32.totalorder %s115, %s129
    %p131 = scmp.eq.s32.totalorder %s22, 0
    %p132 = por %p130, %p131
    %s134 = sadd.s32 %s133, 1
    %p137 = scmp.eq.s32.totalorder %s16, 1
    %p138 = scmp.ne.s32.totalorder %s133, %s135
    %p139 = scmp.eq.s32.totalorder %s16, 0
    %p140 = por %p138, %p139
    %p141 = scmp.ne.s32.totalorder %s133, %s135
    %p142 = scmp.eq.s32.totalorder %s21, 1
    %p143 = por %p141, %p142
    %p144 = scmp.ne.s32.totalorder %s135, %s136
    %p145 = scmp.eq.s32.totalorder %s21, 0
    %p146 = por %p144, %p145
    %p147 = scmp.ne.s32.totalorder %s135, %s136
    %p148 = scmp.eq.s32.totalorder %s22, 1
    %p149 = por %p147, %p148
    %p151 = scmp.ne.s32.totalorder %s136, %s150
    %p152 = scmp.eq.s32.totalorder %s22, 0
    %p153 = por %p151, %p152
    %s155 = sadd.s32 %s154, 1
    %p158 = scmp.eq.s32.totalorder %s16, 1
    %p159 = scmp.ne.s32.totalorder %s154, %s156
    %p160 = scmp.eq.s32.totalorder %s16, 0
    %p161 = por %p159, %p160
    %p162 = scmp.ne.s32.totalorder %s154, %s156
    %p163 = scmp.eq.s32.totalorder %s21, 1
    %p164 = por %p162, %p163
    %p165 = scmp.ne.s32.totalorder %s156, %s157
    %p166 = scmp.eq.s32.totalorder %s21, 0
    %p167 = por %p165, %p166
    %p168 = scmp.ne.s32.totalorder %s156, %s157
    %p169 = scmp.eq.s32.totalorder %s22, 1
    %p170 = por %p168, %p169
    %p172 = scmp.ne.s32.totalorder %s157, %s171
    %p173 = scmp.eq.s32.totalorder %s22, 0
    %p174 = por %p172, %p173
    %s176 = sadd.s32 %s175, 1
    %p179 = scmp.eq.s32.totalorder %s16, 1
    %p180 = scmp.ne.s32.totalorder %s175, %s177
    %p181 = scmp.eq.s32.totalorder %s16, 0
    %p182 = por %p180, %p181
    %p183 = scmp.ne.s32.totalorder %s175, %s177
    %p184 = scmp.eq.s32.totalorder %s21, 1
    %p185 = por %p183, %p184
    %p186 = scmp.ne.s32.totalorder %s177, %s178
    %p187 = scmp.eq.s32.totalorder %s21, 0
    %p188 = por %p186, %p187
    %p189 = scmp.ne.s32.totalorder %s177, %s178
    %p190 = scmp.eq.s32.totalorder %s22, 1
    %p191 = por %p189, %p190
    %p193 = scmp.ne.s32.totalorder %s178, %s192
    %p194 = scmp.eq.s32.totalorder %s22, 0
    %p195 = por %p193, %p194
    %s196 = sadd.s32 %s23, %s26
    %s197 = sadd.s32 %s49, %s37
    %s198 = ssub.s32 %s24, %s45
    %s199 = ssub.s32 %s25, %s41
    %s200 = sor.u32 %s198, %s199
    %s201 = ssub.s32 %s196, %s197
    %s202 = sor.u32 %s200, %s201
    %p203 = scmp.eq.s32.totalorder %s202, 0
    %s205 = sadd.s32 %s204, 1
    %s206 = scalar_select %p203, %s204, %s205
    %p209 = pneg %p203
    %p210 = scmp.eq.s32.totalorder %s16, 1
    %p211 = por %p209, %p210
    %p212 = scmp.ne.s32.totalorder %s204, %s207
    %p213 = scmp.eq.s32.totalorder %s16, 0
    %p214 = por %p212, %p213
    %p215 = scmp.ne.s32.totalorder %s204, %s207
    %p216 = scmp.eq.s32.totalorder %s21, 1
    %p217 = por %p215, %p216
    %p218 = scmp.ne.s32.totalorder %s207, %s208
    %p219 = scmp.eq.s32.totalorder %s21, 0
    %p220 = por %p218, %p219
    %p221 = scmp.ne.s32.totalorder %s207, %s208
    %p222 = scmp.eq.s32.totalorder %s22, 1
    %p223 = por %p221, %p222
    %p225 = scmp.ne.s32.totalorder %s208, %s224
    %p226 = scmp.eq.s32.totalorder %s22, 0
    %p227 = por %p225, %p226
    %s228 = ssub.s32 %s23, %s49
    %s229 = ssub.s32 %s24, %s45
    %s230 = sor.u32 %s228, %s229
    %s231 = ssub.s32 %s25, %s41
    %s232 = sor.u32 %s230, %s231
    %p233 = scmp.eq.s32.totalorder %s232, 0
    %s235 = sadd.s32 %s234, 1
    %s236 = scalar_select %p233, %s234, %s235
    %p239 = pneg %p233
    %p240 = scmp.eq.s32.totalorder %s16, 1
    %p241 = por %p239, %p240
    %p242 = scmp.ne.s32.totalorder %s234, %s237
    %p243 = scmp.eq.s32.totalorder %s16, 0
    %p244 = por %p242, %p243
    %p245 = scmp.ne.s32.totalorder %s234, %s237
    %p246 = scmp.eq.s32.totalorder %s21, 1
    %p247 = por %p245, %p246
    %p248 = scmp.ne.s32.totalorder %s237, %s238
    %p249 = scmp.eq.s32.totalorder %s21, 0
    %p250 = por %p248, %p249
    %p251 = scmp.ne.s32.totalorder %s237, %s238
    %p252 = scmp.eq.s32.totalorder %s22, 1
    %p253 = por %p251, %p252
    %p255 = scmp.ne.s32.totalorder %s238, %s254
    %p256 = scmp.eq.s32.totalorder %s22, 0
    %p257 = por %p255, %p256
    %p258 = scmp.le.s32.totalorder 1, %s16
    %p259 = scmp.lt.s32.totalorder %s16, 3
    %p260 = pnand %p258, %p259
    %p261 = pneg %p260
    // Predicated region
    $region9: #{ocr_pallas.2} parent=5 // pred_check
      _
    $region10: #{ocr_pallas.2} parent=5 // pred_check_branch
      %263 = sbr.rel (%p260) target = $region12
    $region11: #{ocr_pallas.2} parent=5 // pred_region
      %s264 = ssub.s32 %s16, 1
      // Predicated region
      $region13: #{ocr_pallas.2} parent=11 // pred_check
        %p265 = pneg %p125
      $region14: #{ocr_pallas.2} parent=11 // pred_check_branch
        %267 = sbr.rel (%p265) target = $region16
      $region15: #{ocr_pallas.2} parent=11 // pred_region
        _
      $region16: #{ocr_pallas.2} parent=11 // pred_fallthru
        _
      // Predicated region
      $region17: #{ocr_pallas.2} parent=11 // pred_check
        %p268 = pneg %p146
      $region18: #{ocr_pallas.2} parent=11 // pred_check_branch
        %270 = sbr.rel (%p268) target = $region20
      $region19: #{ocr_pallas.2} parent=11 // pred_region
        _
      $region20: #{ocr_pallas.2} parent=11 // pred_fallthru
        _
      // Predicated region
      $region21: #{ocr_pallas.2} parent=11 // pred_check
        %p271 = pneg %p167
      $region22: #{ocr_pallas.2} parent=11 // pred_check_branch
        %273 = sbr.rel (%p271) target = $region24
      $region23: #{ocr_pallas.2} parent=11 // pred_region
        _
      $region24: #{ocr_pallas.2} parent=11 // pred_fallthru
        _
      // Predicated region
      $region25: #{ocr_pallas.2} parent=11 // pred_check
        %p274 = pneg %p188
      $region26: #{ocr_pallas.2} parent=11 // pred_check_branch
        %276 = sbr.rel (%p274) target = $region28
      $region27: #{ocr_pallas.2} parent=11 // pred_region
        _
      $region28: #{ocr_pallas.2} parent=11 // pred_fallthru
        _
    $region12: #{ocr_pallas.2} parent=5 // pred_fallthru
      _
    %p277 = scmp.lt.s32.totalorder %s16, 2
    // Predicated region
    $region29: #{ocr_pallas.2} parent=5 // pred_check
      %p278 = pneg %p277
    $region30: #{ocr_pallas.2} parent=5 // pred_check_branch
      %280 = sbr.rel (%p278) target = $region32
    $region31: #{ocr_pallas.2} parent=5 // pred_region
      // Predicated region
      $region33: #{ocr_pallas.2} parent=31 // pred_check
        %p281 = pneg %p68
      $region34: #{ocr_pallas.2} parent=31 // pred_check_branch
        %283 = sbr.rel (%p281) target = $region36
      $region35: #{ocr_pallas.2} parent=31 // pred_region
        %s284 = sadd.s32 %s23, %s26
        %s285 = smul.u32 4, %s25
        %p286 = scmp.lt.s32.totalorder %s24, 1
        %s287 = scalar_select %p286, %s24, 1
        %p288 = scmp.lt.s32.totalorder %s285, 3
        %s289 = scalar_select %p288, %s285, 3
        %p290 = scmp.lt.s32.totalorder %s284, 0
        %s291 = scalar_select %p290, %s284, 0
        %s292 = sadd.s32 %s291, %s289
        %s293 = smul.addr %s287, 4
        %s294 = sadd.s32 %s292, %s293
        %s295 = smul.addr %s294, 8
        %s296 = scalar_lea.vmem %s0, %s295
        %s297 = sadd.s32 %s23, %s26
        %s298 = smul.u32 4, %s25
      $region36: #{ocr_pallas.2} parent=31 // pred_fallthru
        _
      // Predicated region
      $region37: #{ocr_pallas.2} parent=31 // pred_check
        %p299 = pneg %p98
      $region38: #{ocr_pallas.2} parent=31 // pred_check_branch
        %301 = sbr.rel (%p299) target = $region40
      $region39: #{ocr_pallas.2} parent=31 // pred_region
        %s302 = sadd.s32 %s23, %s26
        %p303 = scmp.lt.s32.totalorder %s24, 1
        %s304 = scalar_select %p303, %s24, 1
        %p305 = scmp.lt.s32.totalorder %s302, 0
        %s306 = scalar_select %p305, %s302, 0
        %s307 = sadd.s32 %s306, %s304
        %s308 = smul.addr %s307, 8
        %s309 = scalar_lea.vmem %s1, %s308
        %s310 = sadd.s32 %s23, %s26
      $region40: #{ocr_pallas.2} parent=31 // pred_fallthru
        _
    $region32: #{ocr_pallas.2} parent=5 // pred_fallthru
      _
    %p311 = scmp.le.s32.totalorder 1, %s16
    %p312 = scmp.lt.s32.totalorder %s16, 3
    %p313 = pnand %p311, %p312
    %p314 = pneg %p313
    // Predicated region
    $region41: #{ocr_pallas.2} parent=5 // pred_check
      _
    $region42: #{ocr_pallas.2} parent=5 // pred_check_branch
      %316 = sbr.rel (%p313) target = $region44
    $region43: #{ocr_pallas.2} parent=5 // pred_region
      %s317 = ssub.s32 %s16, 1
      %s318 = sadd.s32 %s27, %s30
      %s319 = smul.u32 4, %s29
      %p320 = scmp.lt.s32.totalorder %s28, 1
      %s321 = scalar_select %p320, %s28, 1
      %p322 = scmp.lt.s32.totalorder %s319, 3
      %s323 = scalar_select %p322, %s319, 3
      %p324 = scmp.lt.s32.totalorder %s318, 0
      %s325 = scalar_select %p324, %s318, 0
      %s326 = sadd.s32 %s325, %s323
      %s327 = smul.addr %s321, 4
      %s328 = sadd.s32 %s326, %s327
      %s329 = smul.addr %s328, 8
      %s330 = scalar_lea.vmem %s0, %s329
      %p331 = pneg %p74
      %p332 = pneg %p71
      %s333 = sadd.s32 %s27, %s30
      %p334 = scmp.lt.s32.totalorder %s28, 1
      %s335 = scalar_select %p334, %s28, 1
      %p336 = scmp.lt.s32.totalorder %s333, 0
      %s337 = scalar_select %p336, %s333, 0
      %s338 = sadd.s32 %s337, %s335
      %s339 = smul.addr %s338, 8
      %s340 = scalar_lea.vmem %s1, %s339
      %p341 = pneg %p104
      %p342 = pneg %p101
      %p343 = pneg %p125
      %p344 = pneg %p122
      %p345 = pneg %p146
      %p346 = pneg %p143
      %p347 = pneg %p167
      %p348 = pneg %p164
      %p349 = pneg %p188
      %p350 = pneg %p185
      %p351 = pneg %p220
      %p352 = pneg %p217
      %s353 = sadd.s32 %s27, %s30
      %p354 = scmp.lt.s32.totalorder %s28, 1
      %s355 = scalar_select %p354, %s28, 1
      %p356 = scmp.lt.s32.totalorder %s29, 0
      %s357 = scalar_select %p356, %s29, 0
      %p358 = scmp.lt.s32.totalorder %s353, 0
      %s359 = scalar_select %p358, %s353, 0
      %s360 = sadd.s32 %s359, %s357
      %s361 = sadd.s32 %s360, %s355
      %s362 = smul.addr %s361, 4
      %s363 = scalar_lea.vmem %s6, %s362
      %p364 = pneg %p250
      %p365 = pneg %p247
      %p366 = scmp.lt.s32.totalorder %s27, 0
      %s367 = scalar_select %p366, %s27, 0
      %p368 = scmp.lt.s32.totalorder %s28, 1
      %s369 = scalar_select %p368, %s28, 1
      %p370 = scmp.lt.s32.totalorder %s29, 0
      %s371 = scalar_select %p370, %s29, 0
      %s372 = sadd.s32 %s371, %s369
      %s373 = smul.addr %s367, 2
      %s374 = sadd.s32 %s372, %s373
      %s375 = smul.addr %s374, 4
      %s376 = scalar_lea.vmem %s7, %s375
      %s377 = sadd.s32 %s27, %s30
      %s378 = smul.u32 4, %s29
      %p379 = scmp.lt.s32.totalorder %s28, 1
      %s380 = scalar_select %p379, %s28, 1
      %p381 = scmp.lt.s32.totalorder %s378, 3
      %s382 = scalar_select %p381, %s378, 3
      %p383 = scmp.lt.s32.totalorder %s377, 0
      %s384 = scalar_select %p383, %s377, 0
      %s385 = sadd.s32 %s384, %s382
      %s386 = smul.addr %s380, 4
      %s387 = sadd.s32 %s385, %s386
      %s388 = smul.addr %s387, 8
      %s389 = scalar_lea.vmem %s0, %s388
      %s390 = sadd.s32 %s27, %s30
      %s391 = smul.u32 4, %s29
      %s392 = sadd.s32 %s27, %s30
      %p393 = scmp.lt.s32.totalorder %s28, 1
      %s394 = scalar_select %p393, %s28, 1
      %p395 = scmp.lt.s32.totalorder %s392, 0
      %s396 = scalar_select %p395, %s392, 0
      %s397 = sadd.s32 %s396, %s394
      %s398 = smul.addr %s397, 8
      %s399 = scalar_lea.vmem %s1, %s398
      %s400 = sadd.s32 %s27, %s30
      %s401 = sadd.s32 %s27, %s30
      %p402 = scmp.lt.s32.totalorder %s28, 1
      %s403 = scalar_select %p402, %s28, 1
      %p404 = scmp.lt.s32.totalorder %s29, 0
      %s405 = scalar_select %p404, %s29, 0
      %p406 = scmp.lt.s32.totalorder %s401, 0
      %s407 = scalar_select %p406, %s401, 0
      %s408 = sadd.s32 %s407, %s405
      %s409 = sadd.s32 %s408, %s403
      %s410 = smul.addr %s409, 4
      %s411 = scalar_lea.vmem %s6, %s410
      %s412 = sadd.s32 %s27, %s30
      %p413 = scmp.lt.s32.totalorder %s27, 0
      %s414 = scalar_select %p413, %s27, 0
      %p415 = scmp.lt.s32.totalorder %s28, 1
      %s416 = scalar_select %p415, %s28, 1
      %p417 = scmp.lt.s32.totalorder %s29, 0
      %s418 = scalar_select %p417, %s29, 0
      %s419 = sadd.s32 %s418, %s416
      %s420 = smul.addr %s414, 2
      %s421 = sadd.s32 %s419, %s420
      %s422 = smul.addr %s421, 4
      %s423 = scalar_lea.vmem %s7, %s422
      %p424 = scmp.eq.s32.totalorder %s30, 0
      // Predicated region
      $region45: #{ocr_pallas.2} parent=43 // pred_check
        %p425 = pneg %p424
      $region46: #{ocr_pallas.2} parent=43 // pred_check_branch
        %427 = sbr.rel (%p425) target = $region48
      $region47: #{ocr_pallas.2} parent=43 // pred_region
        %vm428 = vcmask 60416
        %429 = vst.msk [vmem:[%s423] sm:$0xf] %vm428, 0.0
      $region48: #{ocr_pallas.2} parent=43 // pred_fallthru
        _
      %v430 = vld [vmem:[%s2] sm:$0xff]
      %v431 = vld [vmem:[%s3] sm:$0xff]
      %v432 = vld [vmem:[%s4] sm:$0x1]
      %v433 = vld [vmem:[#allocation3] sm:$0x1]
      %v434 = vld [vmem:[%s389] sm:$0xff]
      %436 = vset.pattern.permute.xlu0 0
      %437 = vperm.xlu0 %436, %v431
      %v438 = vpop.permute.xlu0 %437
      %vm440 = vcmask 64512
      %v442 = vsel %vm440, %v430, 0
      %444 = vmatpush.msra.mxu0 0.0
      %445 = vmatpush.msra.mxu0 0.0
      %446 = vmatpush.msra.mxu0 0.0
      %447 = vmatpush.msra.mxu0 0.0
      %448 = vmatpush.msra.mxu0 0.0
      %449 = vmatpush.msra.mxu0 0.0
      %450 = vmatpush.msra.mxu0 0.0
      %451 = vmatpush.msra.mxu0 0.0
      %452 = vmatpush.msra.mxu0 0.0
      %453 = vmatpush.msra.mxu0 0.0
      %454 = vmatpush.msra.mxu0 0.0
      %455 = vmatpush.msra.mxu0 0.0
      %456 = vmatpush.msra.mxu0 0.0
      %457 = vmatpush.msra.mxu0 0.0
      %458 = vmatpush.msra.mxu0 0.0
      %459 = vmatpush.msra.mxu0 %v434
      %460 = vmatmul.f32.gmra.mxu0 %v442
      %v461 = vpop.f32.mrf.mxu0
      %v462 = vadd.f32 %v438, %v461
      %463 = vdwg.mxu0
      %v464 = vmax.f32 %v462, 0.0
      %466 = vset.pattern.permute.xlu0 0
      %467 = vperm.xlu0 %466, %v433
      %v468 = vpop.permute.xlu0 %467
      %v470 = vperm.slane %v468, 0
      %v472 = vsel %vm440, %v432, 0
      %474 = vmatpush.msra.mxu0 0.0
      %475 = vmatpush.msra.mxu0 0.0
      %476 = vmatpush.msra.mxu0 0.0
      %477 = vmatpush.msra.mxu0 0.0
      %478 = vmatpush.msra.mxu0 0.0
      %479 = vmatpush.msra.mxu0 0.0
      %480 = vmatpush.msra.mxu0 0.0
      %481 = vmatpush.msra.mxu0 0.0
      %482 = vmatpush.msra.mxu0 0.0
      %483 = vmatpush.msra.mxu0 0.0
      %484 = vmatpush.msra.mxu0 0.0
      %485 = vmatpush.msra.mxu0 0.0
      %486 = vmatpush.msra.mxu0 0.0
      %487 = vmatpush.msra.mxu0 0.0
      %488 = vmatpush.msra.mxu0 0.0
      %489 = vmatpush.msra.mxu0 %v464
      %490 = vmatmul.f32.gmra.mxu0 %v472
      %v491 = vpop.f32.mrf.mxu0
      %v492 = vadd.f32 %v470, %v491
      %493 = vdwg.mxu0
      %v494 = vmax.f32 %v492, 0.0
      %495 = vst [vmem:[#allocation2] sm:$0x1] %v494
      %s496 = scalar_lea.vmem %s389, 8
      %v497 = vld [vmem:[%s496] sm:$0xff]
      %498 = vmatpush.msra.mxu0 0.0
      %499 = vmatpush.msra.mxu0 0.0
      %500 = vmatpush.msra.mxu0 0.0
      %501 = vmatpush.msra.mxu0 0.0
      %502 = vmatpush.msra.mxu0 0.0
      %503 = vmatpush.msra.mxu0 0.0
      %504 = vmatpush.msra.mxu0 0.0
      %505 = vmatpush.msra.mxu0 0.0
      %506 = vmatpush.msra.mxu0 0.0
      %507 = vmatpush.msra.mxu0 0.0
      %508 = vmatpush.msra.mxu0 0.0
      %509 = vmatpush.msra.mxu0 0.0
      %510 = vmatpush.msra.mxu0 0.0
      %511 = vmatpush.msra.mxu0 0.0
      %512 = vmatpush.msra.mxu0 0.0
      %513 = vmatpush.msra.mxu0 %v497
      %514 = vmatmul.f32.gmra.mxu0 %v442
      %v515 = vpop.f32.mrf.mxu0
      %v516 = vadd.f32 %v438, %v515
      %517 = vdwg.mxu0
      %v518 = vmax.f32 %v516, 0.0
      %519 = vmatpush.msra.mxu0 0.0
      %520 = vmatpush.msra.mxu0 0.0
      %521 = vmatpush.msra.mxu0 0.0
      %522 = vmatpush.msra.mxu0 0.0
      %523 = vmatpush.msra.mxu0 0.0
      %524 = vmatpush.msra.mxu0 0.0
      %525 = vmatpush.msra.mxu0 0.0
      %526 = vmatpush.msra.mxu0 0.0
      %527 = vmatpush.msra.mxu0 0.0
      %528 = vmatpush.msra.mxu0 0.0
      %529 = vmatpush.msra.mxu0 0.0
      %530 = vmatpush.msra.mxu0 0.0
      %531 = vmatpush.msra.mxu0 0.0
      %532 = vmatpush.msra.mxu0 0.0
      %533 = vmatpush.msra.mxu0 0.0
      %534 = vmatpush.msra.mxu0 %v518
      %535 = vmatmul.f32.gmra.mxu0 %v472
      %v536 = vpop.f32.mrf.mxu0
      %v537 = vadd.f32 %v470, %v536
      %538 = vdwg.mxu0
      %v539 = vmax.f32 %v537, 0.0
      %540 = vst [vmem:[#allocation2 + $0x1] sm:$0x1] %v539
      %s541 = scalar_lea.vmem %s389, 16
      %v542 = vld [vmem:[%s541] sm:$0xff]
      %543 = vmatpush.msra.mxu0 0.0
      %544 = vmatpush.msra.mxu0 0.0
      %545 = vmatpush.msra.mxu0 0.0
      %546 = vmatpush.msra.mxu0 0.0
      %547 = vmatpush.msra.mxu0 0.0
      %548 = vmatpush.msra.mxu0 0.0
      %549 = vmatpush.msra.mxu0 0.0
      %550 = vmatpush.msra.mxu0 0.0
      %551 = vmatpush.msra.mxu0 0.0
      %552 = vmatpush.msra.mxu0 0.0
      %553 = vmatpush.msra.mxu0 0.0
      %554 = vmatpush.msra.mxu0 0.0
      %555 = vmatpush.msra.mxu0 0.0
      %556 = vmatpush.msra.mxu0 0.0
      %557 = vmatpush.msra.mxu0 0.0
      %558 = vmatpush.msra.mxu0 %v542
      %559 = vmatmul.f32.gmra.mxu0 %v442
      %v560 = vpop.f32.mrf.mxu0
      %v561 = vadd.f32 %v438, %v560
      %562 = vdwg.mxu0
      %v563 = vmax.f32 %v561, 0.0
      %564 = vmatpush.msra.mxu0 0.0
      %565 = vmatpush.msra.mxu0 0.0
      %566 = vmatpush.msra.mxu0 0.0
      %567 = vmatpush.msra.mxu0 0.0
      %568 = vmatpush.msra.mxu0 0.0
      %569 = vmatpush.msra.mxu0 0.0
      %570 = vmatpush.msra.mxu0 0.0
      %571 = vmatpush.msra.mxu0 0.0
      %572 = vmatpush.msra.mxu0 0.0
      %573 = vmatpush.msra.mxu0 0.0
      %574 = vmatpush.msra.mxu0 0.0
      %575 = vmatpush.msra.mxu0 0.0
      %576 = vmatpush.msra.mxu0 0.0
      %577 = vmatpush.msra.mxu0 0.0
      %578 = vmatpush.msra.mxu0 0.0
      %579 = vmatpush.msra.mxu0 %v563
      %580 = vmatmul.f32.gmra.mxu0 %v472
      %v581 = vpop.f32.mrf.mxu0
      %v582 = vadd.f32 %v470, %v581
      %583 = vdwg.mxu0
      %v584 = vmax.f32 %v582, 0.0
      %585 = vst [vmem:[#allocation2 + $0x2] sm:$0x1] %v584
      %s586 = scalar_lea.vmem %s389, 24
      %v587 = vld [vmem:[%s586] sm:$0xff]
      %588 = vmatpush.msra.mxu0 0.0
      %589 = vmatpush.msra.mxu0 0.0
      %590 = vmatpush.msra.mxu0 0.0
      %591 = vmatpush.msra.mxu0 0.0
      %592 = vmatpush.msra.mxu0 0.0
      %593 = vmatpush.msra.mxu0 0.0
      %594 = vmatpush.msra.mxu0 0.0
      %595 = vmatpush.msra.mxu0 0.0
      %596 = vmatpush.msra.mxu0 0.0
      %597 = vmatpush.msra.mxu0 0.0
      %598 = vmatpush.msra.mxu0 0.0
      %599 = vmatpush.msra.mxu0 0.0
      %600 = vmatpush.msra.mxu0 0.0
      %601 = vmatpush.msra.mxu0 0.0
      %602 = vmatpush.msra.mxu0 0.0
      %603 = vmatpush.msra.mxu0 %v587
      %604 = vmatmul.f32.gmra.mxu0 %v442
      %v605 = vpop.f32.mrf.mxu0
      %v606 = vadd.f32 %v438, %v605
      %607 = vdwg.mxu0
      %v608 = vmax.f32 %v606, 0.0
      %609 = vmatpush.msra.mxu0 0.0
      %610 = vmatpush.msra.mxu0 0.0
      %611 = vmatpush.msra.mxu0 0.0
      %612 = vmatpush.msra.mxu0 0.0
      %613 = vmatpush.msra.mxu0 0.0
      %614 = vmatpush.msra.mxu0 0.0
      %615 = vmatpush.msra.mxu0 0.0
      %616 = vmatpush.msra.mxu0 0.0
      %617 = vmatpush.msra.mxu0 0.0
      %618 = vmatpush.msra.mxu0 0.0
      %619 = vmatpush.msra.mxu0 0.0
      %620 = vmatpush.msra.mxu0 0.0
      %621 = vmatpush.msra.mxu0 0.0
      %622 = vmatpush.msra.mxu0 0.0
      %623 = vmatpush.msra.mxu0 0.0
      %624 = vmatpush.msra.mxu0 %v608
      %625 = vmatmul.f32.gmra.mxu0 %v472
      %v626 = vpop.f32.mrf.mxu0
      %v627 = vadd.f32 %v470, %v626
      %628 = vdwg.mxu0
      %v629 = vmax.f32 %v627, 0.0
      %630 = vst [vmem:[#allocation2 + $0x3] sm:$0x1] %v629
      %v631 = vld [vmem:[#allocation2] sm:$0xf]
      %632 = vst [vmem:[%s411] sm:$0xf] %v631
      %v633 = vld [vmem:[%s399] sm:$0xff]
      %634 = vmatpush.xpose.msra.mxu0 0.0
      %635 = vmatpush.xpose.msra.mxu0 0.0
      %636 = vmatpush.xpose.msra.mxu0 0.0
      %637 = vmatpush.xpose.msra.mxu0 0.0
      %638 = vmatpush.xpose.msra.mxu0 0.0
      %639 = vmatpush.xpose.msra.mxu0 0.0
      %640 = vmatpush.xpose.msra.mxu0 0.0
      %641 = vmatpush.xpose.msra.mxu0 0.0
      %642 = vmatpush.xpose.msra.mxu0 0.0
      %643 = vmatpush.xpose.msra.mxu0 0.0
      %644 = vmatpush.xpose.msra.mxu0 0.0
      %645 = vmatpush.xpose.msra.mxu0 0.0
      %646 = vmatpush.xpose.msra.mxu0 0.0
      %647 = vmatpush.xpose.msra.mxu0 0.0
      %648 = vmatpush.xpose.msra.mxu0 0.0
      %649 = vmatpush.xpose.msra.mxu0 %v633
      %650 = vmatmul.f32.gmra.mxu0 %v631
      %v651 = vpop.f32.mrf.mxu0
      %v652 = vadd.f32 0.0, %v651
      %653 = vdwg.mxu0
      %v654 = vld [vmem:[%s423] sm:$0xf]
      %v655 = vadd.f32 %v654, %v652
      %vm656 = vcmask 60416
      %657 = vst.msk [vmem:[%s423] sm:$0xf] %vm656, %v655
      %s658 = sadd.s32 %s27, %s30
      %p659 = scmp.lt.s32.totalorder %s28, 1
      %s660 = scalar_select %p659, %s28, 1
      %p661 = scmp.lt.s32.totalorder %s29, 0
      %s662 = scalar_select %p661, %s29, 0
      %p663 = scmp.lt.s32.totalorder %s658, 0
      %s664 = scalar_select %p663, %s658, 0
      %s665 = sadd.s32 %s664, %s662
      %s666 = sadd.s32 %s665, %s660
      %s667 = smul.addr %s666, 4
      %s668 = scalar_lea.vmem %s6, %s667
      %p669 = scmp.lt.s32.totalorder %s27, 0
      %s670 = scalar_select %p669, %s27, 0
      %p671 = scmp.lt.s32.totalorder %s28, 1
      %s672 = scalar_select %p671, %s28, 1
      %p673 = scmp.lt.s32.totalorder %s29, 0
      %s674 = scalar_select %p673, %s29, 0
      %s675 = sadd.s32 %s674, %s672
      %s676 = smul.addr %s670, 2
      %s677 = sadd.s32 %s675, %s676
      %s678 = smul.addr %s677, 4
      %s679 = scalar_lea.vmem %s7, %s678
      // Predicated region
      $region49: #{ocr_pallas.2} parent=43 // pred_check
        %p680 = pneg %p217
      $region50: #{ocr_pallas.2} parent=43 // pred_check_branch
        %682 = sbr.rel (%p680) target = $region52
      $region51: #{ocr_pallas.2} parent=43 // pred_region
        %s683 = sadd.s32 %s27, %s30
      $region52: #{ocr_pallas.2} parent=43 // pred_fallthru
        _
      // Predicated region
      $region53: #{ocr_pallas.2} parent=43 // pred_check
        %p684 = pneg %p247
      $region54: #{ocr_pallas.2} parent=43 // pred_check_branch
        %686 = sbr.rel (%p684) target = $region56
      $region55: #{ocr_pallas.2} parent=43 // pred_region
        _
      $region56: #{ocr_pallas.2} parent=43 // pred_fallthru
        _
    $region44: #{ocr_pallas.2} parent=5 // pred_fallthru
      _
    %p687 = scmp.le.s32.totalorder 2, %s16
    // Predicated region
    $region57: #{ocr_pallas.2} parent=5 // pred_check
      %p688 = pneg %p687
    $region58: #{ocr_pallas.2} parent=5 // pred_check_branch
      %690 = sbr.rel (%p688) target = $region60
    $region59: #{ocr_pallas.2} parent=5 // pred_region
      %s691 = ssub.s32 %s16, 2
      // Predicated region
      $region61: #{ocr_pallas.2} parent=59 // pred_check
        %p692 = pneg %p223
      $region62: #{ocr_pallas.2} parent=59 // pred_check_branch
        %694 = sbr.rel (%p692) target = $region64
      $region63: #{ocr_pallas.2} parent=59 // pred_region
        %s695 = sadd.s32 %s31, %s34
        %p696 = scmp.lt.s32.totalorder %s32, 1
        %s697 = scalar_select %p696, %s32, 1
        %p698 = scmp.lt.s32.totalorder %s33, 0
        %s699 = scalar_select %p698, %s33, 0
        %p700 = scmp.lt.s32.totalorder %s695, 0
        %s701 = scalar_select %p700, %s695, 0
        %s702 = sadd.s32 %s701, %s699
        %s703 = sadd.s32 %s702, %s697
        %s704 = smul.addr %s703, 4
        %s705 = scalar_lea.vmem %s6, %s704
      $region64: #{ocr_pallas.2} parent=59 // pred_fallthru
        _
      // Predicated region
      $region65: #{ocr_pallas.2} parent=59 // pred_check
        %p706 = pneg %p253
      $region66: #{ocr_pallas.2} parent=59 // pred_check_branch
        %708 = sbr.rel (%p706) target = $region68
      $region67: #{ocr_pallas.2} parent=59 // pred_region
        %p709 = scmp.lt.s32.totalorder %s31, 0
        %s710 = scalar_select %p709, %s31, 0
        %p711 = scmp.lt.s32.totalorder %s32, 1
        %s712 = scalar_select %p711, %s32, 1
        %p713 = scmp.lt.s32.totalorder %s33, 0
        %s714 = scalar_select %p713, %s33, 0
        %s715 = sadd.s32 %s714, %s712
        %s716 = smul.addr %s710, 2
        %s717 = sadd.s32 %s715, %s716
        %s718 = smul.addr %s717, 4
        %s719 = scalar_lea.vmem %s7, %s718
      $region68: #{ocr_pallas.2} parent=59 // pred_fallthru
        _
    $region60: #{ocr_pallas.2} parent=5 // pred_fallthru
      _
  $region6: #{ocr_pallas.2} parent=0 // loop_footer
    %s20 = sadd.s32 1, %s16
  $region7: #{ocr_pallas.2} parent=0 // loop_footer_branch
    %15 = sbr.rel target = $region3
  $region8: #{ocr_pallas.2} parent=0 // loop_exit
    _

// kernel: ocr_pallas.3
$region0: #{ocr_pallas.3}
  #allocation0 [shape = 'u32[]', space=smem, size = 0x4, offset = 0x4, fixed_abs, tag = 'smem constant byte address 0x4 - core index']
  #allocation1 [shape = 'u32[72,128]{1,0:T(1,128)}', space=vmem, size = 0x9000, scoped, tag = 'internal scratch']
  %s0 = inlined_call_operand.vmem [shape: f32[2,4,128], index: 0, kind: input, shape index: {}]
  %s1 = inlined_call_operand.vmem [shape: f32[2,4,8], index: 1, kind: input, shape index: {}]
  %s2 = inlined_call_operand.vmem [shape: f32[2,4,8], index: 2, kind: input, shape index: {}]
  %s3 = inlined_call_operand.vmem [shape: f32[3,4,4], index: 3, kind: input, shape index: {}]
  %s4 = inlined_call_operand.vmem [shape: f32[3,4,1], index: 4, kind: input, shape index: {}]
  %s5 = inlined_call_operand.vmem [shape: f32[128,4], index: 5, kind: input, shape index: {}]
  %s6 = inlined_call_operand.vmem [shape: f32[128,4], index: 6, kind: input, shape index: {}]
  %s7 = inlined_call_operand.vmem [shape: f32[128,1], index: 7, kind: input, shape index: {}]
  %s8 = inlined_call_operand.vmem [shape: f32[8,128], index: 8, kind: input, shape index: {}]
  %s9 = inlined_call_operand.vmem [shape: f32[8,1], index: 9, kind: input, shape index: {}]
  %s10 = inlined_call_operand.vmem [shape: f32[2,8,128], index: 10, kind: output, shape index: {}]
  %s11 = sld [smem:[#allocation0]]
  $region73: #{ocr_pallas.3} parent=0
    _
  %s13 = ssub.s32 1, %s11
  %s14 = scalar_select 0, %s13, %s11
  loop: start=0, step=1, limit=4
  $region2: #{ocr_pallas.3} parent=0 // loop_pre_header
    _
  $region3: #{ocr_pallas.3} parent=0 // loop_header
    %s16 = sphi 0, %s20
    %p17 = scmp.ge.s32.totalorder %s16, 4
    %s23 = sphi 0, %s35
    %s24 = sphi 0, %s31
    %s25 = sphi 0, %s23
    %s26 = sphi 0, %s24
    %s27 = sphi 0, %s25
    %s28 = sphi 0, %s26
    %s40 = sphi 0, %s42
    %s43 = sphi 0, %s40
    %s44 = sphi 0, %s43
    %s60 = sphi 0, %s44
    %s66 = sphi 0, %s68
    %s69 = sphi 0, %s66
    %s70 = sphi 0, %s69
    %s86 = sphi 0, %s70
    %s92 = sphi 0, %s94
    %s95 = sphi 0, %s92
    %s96 = sphi 0, %s95
    %s112 = sphi 0, %s96
    %s116 = sphi 0, %s116
    %s118 = sphi 0, %s116
    %s119 = sphi 0, %s118
    %s133 = sphi 0, %s119
    %s137 = sphi 0, %s137
    %s139 = sphi 0, %s137
    %s140 = sphi 0, %s139
    %s154 = sphi 0, %s140
    %s158 = sphi 0, %s158
    %s160 = sphi 0, %s158
    %s161 = sphi 0, %s160
    %s175 = sphi 0, %s161
    %s179 = sphi 0, %s179
    %s181 = sphi 0, %s179
    %s182 = sphi 0, %s181
    %s196 = sphi 0, %s182
    %s200 = sphi 0, %s200
    %s202 = sphi 0, %s200
    %s203 = sphi 0, %s202
    %s217 = sphi 0, %s203
    %s221 = sphi 0, %s221
    %s223 = sphi 0, %s221
    %s224 = sphi 0, %s223
    %s238 = sphi 0, %s224
    %s242 = sphi 0, %s242
    %s244 = sphi 0, %s242
    %s245 = sphi 0, %s244
    %s259 = sphi 0, %s245
    %s267 = sphi 0, %s269
    %s270 = sphi 0, %s267
    %s271 = sphi 0, %s270
    %s287 = sphi 0, %s271
  $region4: #{ocr_pallas.3} parent=0 // loop_header_branch
    %19 = sbr.rel (%p17) target = $region8
  $region5: #{ocr_pallas.3} parent=0 // loop_body
    %s21 = ssub.s32 %s16, 1
    %s22 = ssub.s32 %s16, 2
    %s29 = sadd.s32 1, %s24
    %p30 = scmp.ge.s32.totalorder %s29, 1
    %s31 = scalar_select %p30, 0, %s29
    %s32 = sadd.s32 1, %s23
    %s33 = scalar_select %p30, %s32, %s23
    %p34 = scmp.ge.s32.totalorder %s33, 2
    %s35 = scalar_select %p34, 0, %s33
    %s36 = ssub.s32 %s23, %s35
    %s37 = ssub.s32 %s24, %s31
    %s38 = sor.u32 %s36, %s37
    %p39 = scmp.eq.s32.totalorder %s38, 0
    %s41 = sadd.s32 %s40, 1
    %s42 = scalar_select %p39, %s40, %s41
    %p45 = pneg %p39
    %p46 = scmp.eq.s32.totalorder %s16, 1
    %p47 = por %p45, %p46
    %p48 = scmp.ne.s32.totalorder %s40, %s43
    %p49 = scmp.eq.s32.totalorder %s16, 0
    %p50 = por %p48, %p49
    %p51 = scmp.ne.s32.totalorder %s40, %s43
    %p52 = scmp.eq.s32.totalorder %s21, 1
    %p53 = por %p51, %p52
    %p54 = scmp.ne.s32.totalorder %s43, %s44
    %p55 = scmp.eq.s32.totalorder %s21, 0
    %p56 = por %p54, %p55
    %p57 = scmp.ne.s32.totalorder %s43, %s44
    %p58 = scmp.eq.s32.totalorder %s22, 1
    %p59 = por %p57, %p58
    %p61 = scmp.ne.s32.totalorder %s44, %s60
    %p62 = scmp.eq.s32.totalorder %s22, 0
    %p63 = por %p61, %p62
    %s64 = ssub.s32 %s23, %s35
    %p65 = scmp.eq.s32.totalorder %s64, 0
    %s67 = sadd.s32 %s66, 1
    %s68 = scalar_select %p65, %s66, %s67
    %p71 = pneg %p65
    %p72 = scmp.eq.s32.totalorder %s16, 1
    %p73 = por %p71, %p72
    %p74 = scmp.ne.s32.totalorder %s66, %s69
    %p75 = scmp.eq.s32.totalorder %s16, 0
    %p76 = por %p74, %p75
    %p77 = scmp.ne.s32.totalorder %s66, %s69
    %p78 = scmp.eq.s32.totalorder %s21, 1
    %p79 = por %p77, %p78
    %p80 = scmp.ne.s32.totalorder %s69, %s70
    %p81 = scmp.eq.s32.totalorder %s21, 0
    %p82 = por %p80, %p81
    %p83 = scmp.ne.s32.totalorder %s69, %s70
    %p84 = scmp.eq.s32.totalorder %s22, 1
    %p85 = por %p83, %p84
    %p87 = scmp.ne.s32.totalorder %s70, %s86
    %p88 = scmp.eq.s32.totalorder %s22, 0
    %p89 = por %p87, %p88
    %s90 = ssub.s32 %s23, %s35
    %p91 = scmp.eq.s32.totalorder %s90, 0
    %s93 = sadd.s32 %s92, 1
    %s94 = scalar_select %p91, %s92, %s93
    %p97 = pneg %p91
    %p98 = scmp.eq.s32.totalorder %s16, 1
    %p99 = por %p97, %p98
    %p100 = scmp.ne.s32.totalorder %s92, %s95
    %p101 = scmp.eq.s32.totalorder %s16, 0
    %p102 = por %p100, %p101
    %p103 = scmp.ne.s32.totalorder %s92, %s95
    %p104 = scmp.eq.s32.totalorder %s21, 1
    %p105 = por %p103, %p104
    %p106 = scmp.ne.s32.totalorder %s95, %s96
    %p107 = scmp.eq.s32.totalorder %s21, 0
    %p108 = por %p106, %p107
    %p109 = scmp.ne.s32.totalorder %s95, %s96
    %p110 = scmp.eq.s32.totalorder %s22, 1
    %p111 = por %p109, %p110
    %p113 = scmp.ne.s32.totalorder %s96, %s112
    %p114 = scmp.eq.s32.totalorder %s22, 0
    %p115 = por %p113, %p114
    %s117 = sadd.s32 %s116, 1
    %p120 = scmp.eq.s32.totalorder %s16, 1
    %p121 = scmp.ne.s32.totalorder %s116, %s118
    %p122 = scmp.eq.s32.totalorder %s16, 0
    %p123 = por %p121, %p122
    %p124 = scmp.ne.s32.totalorder %s116, %s118
    %p125 = scmp.eq.s32.totalorder %s21, 1
    %p126 = por %p124, %p125
    %p127 = scmp.ne.s32.totalorder %s118, %s119
    %p128 = scmp.eq.s32.totalorder %s21, 0
    %p129 = por %p127, %p128
    %p130 = scmp.ne.s32.totalorder %s118, %s119
    %p131 = scmp.eq.s32.totalorder %s22, 1
    %p132 = por %p130, %p131
    %p134 = scmp.ne.s32.totalorder %s119, %s133
    %p135 = scmp.eq.s32.totalorder %s22, 0
    %p136 = por %p134, %p135
    %s138 = sadd.s32 %s137, 1
    %p141 = scmp.eq.s32.totalorder %s16, 1
    %p142 = scmp.ne.s32.totalorder %s137, %s139
    %p143 = scmp.eq.s32.totalorder %s16, 0
    %p144 = por %p142, %p143
    %p145 = scmp.ne.s32.totalorder %s137, %s139
    %p146 = scmp.eq.s32.totalorder %s21, 1
    %p147 = por %p145, %p146
    %p148 = scmp.ne.s32.totalorder %s139, %s140
    %p149 = scmp.eq.s32.totalorder %s21, 0
    %p150 = por %p148, %p149
    %p151 = scmp.ne.s32.totalorder %s139, %s140
    %p152 = scmp.eq.s32.totalorder %s22, 1
    %p153 = por %p151, %p152
    %p155 = scmp.ne.s32.totalorder %s140, %s154
    %p156 = scmp.eq.s32.totalorder %s22, 0
    %p157 = por %p155, %p156
    %s159 = sadd.s32 %s158, 1
    %p162 = scmp.eq.s32.totalorder %s16, 1
    %p163 = scmp.ne.s32.totalorder %s158, %s160
    %p164 = scmp.eq.s32.totalorder %s16, 0
    %p165 = por %p163, %p164
    %p166 = scmp.ne.s32.totalorder %s158, %s160
    %p167 = scmp.eq.s32.totalorder %s21, 1
    %p168 = por %p166, %p167
    %p169 = scmp.ne.s32.totalorder %s160, %s161
    %p170 = scmp.eq.s32.totalorder %s21, 0
    %p171 = por %p169, %p170
    %p172 = scmp.ne.s32.totalorder %s160, %s161
    %p173 = scmp.eq.s32.totalorder %s22, 1
    %p174 = por %p172, %p173
    %p176 = scmp.ne.s32.totalorder %s161, %s175
    %p177 = scmp.eq.s32.totalorder %s22, 0
    %p178 = por %p176, %p177
    %s180 = sadd.s32 %s179, 1
    %p183 = scmp.eq.s32.totalorder %s16, 1
    %p184 = scmp.ne.s32.totalorder %s179, %s181
    %p185 = scmp.eq.s32.totalorder %s16, 0
    %p186 = por %p184, %p185
    %p187 = scmp.ne.s32.totalorder %s179, %s181
    %p188 = scmp.eq.s32.totalorder %s21, 1
    %p189 = por %p187, %p188
    %p190 = scmp.ne.s32.totalorder %s181, %s182
    %p191 = scmp.eq.s32.totalorder %s21, 0
    %p192 = por %p190, %p191
    %p193 = scmp.ne.s32.totalorder %s181, %s182
    %p194 = scmp.eq.s32.totalorder %s22, 1
    %p195 = por %p193, %p194
    %p197 = scmp.ne.s32.totalorder %s182, %s196
    %p198 = scmp.eq.s32.totalorder %s22, 0
    %p199 = por %p197, %p198
    %s201 = sadd.s32 %s200, 1
    %p204 = scmp.eq.s32.totalorder %s16, 1
    %p205 = scmp.ne.s32.totalorder %s200, %s202
    %p206 = scmp.eq.s32.totalorder %s16, 0
    %p207 = por %p205, %p206
    %p208 = scmp.ne.s32.totalorder %s200, %s202
    %p209 = scmp.eq.s32.totalorder %s21, 1
    %p210 = por %p208, %p209
    %p211 = scmp.ne.s32.totalorder %s202, %s203
    %p212 = scmp.eq.s32.totalorder %s21, 0
    %p213 = por %p211, %p212
    %p214 = scmp.ne.s32.totalorder %s202, %s203
    %p215 = scmp.eq.s32.totalorder %s22, 1
    %p216 = por %p214, %p215
    %p218 = scmp.ne.s32.totalorder %s203, %s217
    %p219 = scmp.eq.s32.totalorder %s22, 0
    %p220 = por %p218, %p219
    %s222 = sadd.s32 %s221, 1
    %p225 = scmp.eq.s32.totalorder %s16, 1
    %p226 = scmp.ne.s32.totalorder %s221, %s223
    %p227 = scmp.eq.s32.totalorder %s16, 0
    %p228 = por %p226, %p227
    %p229 = scmp.ne.s32.totalorder %s221, %s223
    %p230 = scmp.eq.s32.totalorder %s21, 1
    %p231 = por %p229, %p230
    %p232 = scmp.ne.s32.totalorder %s223, %s224
    %p233 = scmp.eq.s32.totalorder %s21, 0
    %p234 = por %p232, %p233
    %p235 = scmp.ne.s32.totalorder %s223, %s224
    %p236 = scmp.eq.s32.totalorder %s22, 1
    %p237 = por %p235, %p236
    %p239 = scmp.ne.s32.totalorder %s224, %s238
    %p240 = scmp.eq.s32.totalorder %s22, 0
    %p241 = por %p239, %p240
    %s243 = sadd.s32 %s242, 1
    %p246 = scmp.eq.s32.totalorder %s16, 1
    %p247 = scmp.ne.s32.totalorder %s242, %s244
    %p248 = scmp.eq.s32.totalorder %s16, 0
    %p249 = por %p247, %p248
    %p250 = scmp.ne.s32.totalorder %s242, %s244
    %p251 = scmp.eq.s32.totalorder %s21, 1
    %p252 = por %p250, %p251
    %p253 = scmp.ne.s32.totalorder %s244, %s245
    %p254 = scmp.eq.s32.totalorder %s21, 0
    %p255 = por %p253, %p254
    %p256 = scmp.ne.s32.totalorder %s244, %s245
    %p257 = scmp.eq.s32.totalorder %s22, 1
    %p258 = por %p256, %p257
    %p260 = scmp.ne.s32.totalorder %s245, %s259
    %p261 = scmp.eq.s32.totalorder %s22, 0
    %p262 = por %p260, %p261
    %s263 = ssub.s32 %s23, %s35
    %s264 = ssub.s32 %s24, %s31
    %s265 = sor.u32 %s263, %s264
    %p266 = scmp.eq.s32.totalorder %s265, 0
    %s268 = sadd.s32 %s267, 1
    %s269 = scalar_select %p266, %s267, %s268
    %p272 = pneg %p266
    %p273 = scmp.eq.s32.totalorder %s16, 1
    %p274 = por %p272, %p273
    %p275 = scmp.ne.s32.totalorder %s267, %s270
    %p276 = scmp.eq.s32.totalorder %s16, 0
    %p277 = por %p275, %p276
    %p278 = scmp.ne.s32.totalorder %s267, %s270
    %p279 = scmp.eq.s32.totalorder %s21, 1
    %p280 = por %p278, %p279
    %p281 = scmp.ne.s32.totalorder %s270, %s271
    %p282 = scmp.eq.s32.totalorder %s21, 0
    %p283 = por %p281, %p282
    %p284 = scmp.ne.s32.totalorder %s270, %s271
    %p285 = scmp.eq.s32.totalorder %s22, 1
    %p286 = por %p284, %p285
    %p288 = scmp.ne.s32.totalorder %s271, %s287
    %p289 = scmp.eq.s32.totalorder %s22, 0
    %p290 = por %p288, %p289
    %p291 = scmp.le.s32.totalorder 1, %s16
    %p292 = scmp.lt.s32.totalorder %s16, 3
    %p293 = pnand %p291, %p292
    %p294 = pneg %p293
    // Predicated region
    $region9: #{ocr_pallas.3} parent=5 // pred_check
      _
    $region10: #{ocr_pallas.3} parent=5 // pred_check_branch
      %296 = sbr.rel (%p293) target = $region12
    $region11: #{ocr_pallas.3} parent=5 // pred_region
      %s297 = ssub.s32 %s16, 1
      // Predicated region
      $region13: #{ocr_pallas.3} parent=11 // pred_check
        %p298 = pneg %p129
      $region14: #{ocr_pallas.3} parent=11 // pred_check_branch
        %300 = sbr.rel (%p298) target = $region16
      $region15: #{ocr_pallas.3} parent=11 // pred_region
        _
      $region16: #{ocr_pallas.3} parent=11 // pred_fallthru
        _
      // Predicated region
      $region17: #{ocr_pallas.3} parent=11 // pred_check
        %p301 = pneg %p150
      $region18: #{ocr_pallas.3} parent=11 // pred_check_branch
        %303 = sbr.rel (%p301) target = $region20
      $region19: #{ocr_pallas.3} parent=11 // pred_region
        _
      $region20: #{ocr_pallas.3} parent=11 // pred_fallthru
        _
      // Predicated region
      $region21: #{ocr_pallas.3} parent=11 // pred_check
        %p304 = pneg %p171
      $region22: #{ocr_pallas.3} parent=11 // pred_check_branch
        %306 = sbr.rel (%p304) target = $region24
      $region23: #{ocr_pallas.3} parent=11 // pred_region
        _
      $region24: #{ocr_pallas.3} parent=11 // pred_fallthru
        _
      // Predicated region
      $region25: #{ocr_pallas.3} parent=11 // pred_check
        %p307 = pneg %p192
      $region26: #{ocr_pallas.3} parent=11 // pred_check_branch
        %309 = sbr.rel (%p307) target = $region28
      $region27: #{ocr_pallas.3} parent=11 // pred_region
        _
      $region28: #{ocr_pallas.3} parent=11 // pred_fallthru
        _
      // Predicated region
      $region29: #{ocr_pallas.3} parent=11 // pred_check
        %p310 = pneg %p213
      $region30: #{ocr_pallas.3} parent=11 // pred_check_branch
        %312 = sbr.rel (%p310) target = $region32
      $region31: #{ocr_pallas.3} parent=11 // pred_region
        _
      $region32: #{ocr_pallas.3} parent=11 // pred_fallthru
        _
      // Predicated region
      $region33: #{ocr_pallas.3} parent=11 // pred_check
        %p313 = pneg %p234
      $region34: #{ocr_pallas.3} parent=11 // pred_check_branch
        %315 = sbr.rel (%p313) target = $region36
      $region35: #{ocr_pallas.3} parent=11 // pred_region
        _
      $region36: #{ocr_pallas.3} parent=11 // pred_fallthru
        _
      // Predicated region
      $region37: #{ocr_pallas.3} parent=11 // pred_check
        %p316 = pneg %p255
      $region38: #{ocr_pallas.3} parent=11 // pred_check_branch
        %318 = sbr.rel (%p316) target = $region40
      $region39: #{ocr_pallas.3} parent=11 // pred_region
        _
      $region40: #{ocr_pallas.3} parent=11 // pred_fallthru
        _
    $region12: #{ocr_pallas.3} parent=5 // pred_fallthru
      _
    %p319 = scmp.lt.s32.totalorder %s16, 2
    // Predicated region
    $region41: #{ocr_pallas.3} parent=5 // pred_check
      %p320 = pneg %p319
    $region42: #{ocr_pallas.3} parent=5 // pred_check_branch
      %322 = sbr.rel (%p320) target = $region44
    $region43: #{ocr_pallas.3} parent=5 // pred_region
      // Predicated region
      $region45: #{ocr_pallas.3} parent=43 // pred_check
        %p323 = pneg %p50
      $region46: #{ocr_pallas.3} parent=43 // pred_check_branch
        %325 = sbr.rel (%p323) target = $region48
      $region47: #{ocr_pallas.3} parent=43 // pred_region
        %p326 = scmp.lt.s32.totalorder %s23, 1
        %s327 = scalar_select %p326, %s23, 1
        %p328 = scmp.lt.s32.totalorder %s24, 0
        %s329 = scalar_select %p328, %s24, 0
        %s330 = sadd.s32 %s329, %s327
        %s331 = smul.addr %s330, 4
        %s332 = scalar_lea.vmem %s0, %s331
      $region48: #{ocr_pallas.3} parent=43 // pred_fallthru
        _
      // Predicated region
      $region49: #{ocr_pallas.3} parent=43 // pred_check
        %p333 = pneg %p76
      $region50: #{ocr_pallas.3} parent=43 // pred_check_branch
        %335 = sbr.rel (%p333) target = $region52
      $region51: #{ocr_pallas.3} parent=43 // pred_region
        %p336 = scmp.lt.s32.totalorder %s23, 1
        %s337 = scalar_select %p336, %s23, 1
        %s338 = smul.addr %s337, 4
        %s339 = scalar_lea.vmem %s1, %s338
      $region52: #{ocr_pallas.3} parent=43 // pred_fallthru
        _
      // Predicated region
      $region53: #{ocr_pallas.3} parent=43 // pred_check
        %p340 = pneg %p102
      $region54: #{ocr_pallas.3} parent=43 // pred_check_branch
        %342 = sbr.rel (%p340) target = $region56
      $region55: #{ocr_pallas.3} parent=43 // pred_region
        %p343 = scmp.lt.s32.totalorder %s23, 1
        %s344 = scalar_select %p343, %s23, 1
        %s345 = smul.addr %s344, 4
        %s346 = scalar_lea.vmem %s2, %s345
      $region56: #{ocr_pallas.3} parent=43 // pred_fallthru
        _
    $region44: #{ocr_pallas.3} parent=5 // pred_fallthru
      _
    %p347 = scmp.le.s32.totalorder 1, %s16
    %p348 = scmp.lt.s32.totalorder %s16, 3
    %p349 = pnand %p347, %p348
    %p350 = pneg %p349
    // Predicated region
    $region57: #{ocr_pallas.3} parent=5 // pred_check
      _
    $region58: #{ocr_pallas.3} parent=5 // pred_check_branch
      %352 = sbr.rel (%p349) target = $region60
    $region59: #{ocr_pallas.3} parent=5 // pred_region
      %s353 = ssub.s32 %s16, 1
      %p354 = scmp.lt.s32.totalorder %s25, 1
      %s355 = scalar_select %p354, %s25, 1
      %p356 = scmp.lt.s32.totalorder %s26, 0
      %s357 = scalar_select %p356, %s26, 0
      %s358 = sadd.s32 %s357, %s355
      %s359 = smul.addr %s358, 4
      %s360 = scalar_lea.vmem %s0, %s359
      %p361 = pneg %p56
      %p362 = pneg %p53
      %p363 = scmp.lt.s32.totalorder %s25, 1
      %s364 = scalar_select %p363, %s25, 1
      %s365 = smul.addr %s364, 4
      %s366 = scalar_lea.vmem %s1, %s365
      %p367 = pneg %p82
      %p368 = pneg %p79
      %p369 = scmp.lt.s32.totalorder %s25, 1
      %s370 = scalar_select %p369, %s25, 1
      %s371 = smul.addr %s370, 4
      %s372 = scalar_lea.vmem %s2, %s371
      %p373 = pneg %p108
      %p374 = pneg %p105
      %p375 = pneg %p129
      %p376 = pneg %p126
      %p377 = pneg %p150
      %p378 = pneg %p147
      %p379 = pneg %p171
      %p380 = pneg %p168
      %p381 = pneg %p192
      %p382 = pneg %p189
      %p383 = pneg %p213
      %p384 = pneg %p210
      %p385 = pneg %p234
      %p386 = pneg %p231
      %p387 = pneg %p255
      %p388 = pneg %p252
      %p389 = pneg %p283
      %p390 = pneg %p280
      %p391 = scmp.lt.s32.totalorder %s25, 1
      %s392 = scalar_select %p391, %s25, 1
      %p393 = scmp.lt.s32.totalorder %s26, 0
      %s394 = scalar_select %p393, %s26, 0
      %s395 = sadd.s32 %s394, %s392
      %s396 = smul.addr %s395, 8
      %s397 = scalar_lea.vmem %s10, %s396
      %p398 = scmp.lt.s32.totalorder %s25, 1
      %s399 = scalar_select %p398, %s25, 1
      %p400 = scmp.lt.s32.totalorder %s26, 0
      %s401 = scalar_select %p400, %s26, 0
      %s402 = sadd.s32 %s401, %s399
      %s403 = smul.addr %s402, 4
      %s404 = scalar_lea.vmem %s0, %s403
      %p405 = scmp.lt.s32.totalorder %s25, 1
      %s406 = scalar_select %p405, %s25, 1
      %s407 = smul.addr %s406, 4
      %s408 = scalar_lea.vmem %s1, %s407
      %p409 = scmp.lt.s32.totalorder %s25, 1
      %s410 = scalar_select %p409, %s25, 1
      %s411 = smul.addr %s410, 4
      %s412 = scalar_lea.vmem %s2, %s411
      %p413 = scmp.lt.s32.totalorder %s25, 1
      %s414 = scalar_select %p413, %s25, 1
      %p415 = scmp.lt.s32.totalorder %s26, 0
      %s416 = scalar_select %p415, %s26, 0
      %s417 = sadd.s32 %s416, %s414
      %s418 = smul.addr %s417, 8
      %s419 = scalar_lea.vmem %s10, %s418
      %v420 = vld [vmem:[%s404] sm:$0xf]
      %v421 = vld [vmem:[%s408] sm:$0xf]
      %v422 = vld [vmem:[%s412] sm:$0xf]
      %v423 = vld [vmem:[%s3] sm:$0xf]
      %v424 = vld [vmem:[%s4] sm:$0xf]
      %426 = vset.pattern.permute.xlu0 0
      %427 = vperm.xlu0 %426, %v424
      %v428 = vpop.permute.xlu0 %427
      %vm430 = vcmask 31744
      %v432 = vsel %vm430, %v423, 0
      %vm434 = vcmask 1043456
      %v436 = vsel %vm434, %v420, 0
      %438 = vmatpush.msra.mxu0 0.0
      %439 = vmatpush.msra.mxu0 0.0
      %440 = vmatpush.msra.mxu0 0.0
      %441 = vmatpush.msra.mxu0 0.0
      %442 = vmatpush.msra.mxu0 0.0
      %443 = vmatpush.msra.mxu0 0.0
      %444 = vmatpush.msra.mxu0 0.0
      %445 = vmatpush.msra.mxu0 0.0
      %446 = vmatpush.msra.mxu0 0.0
      %447 = vmatpush.msra.mxu0 0.0
      %448 = vmatpush.msra.mxu0 0.0
      %449 = vmatpush.msra.mxu0 0.0
      %450 = vmatpush.msra.mxu0 0.0
      %451 = vmatpush.msra.mxu0 0.0
      %452 = vmatpush.msra.mxu0 0.0
      %453 = vmatpush.msra.mxu0 %v436
      %454 = vmatmul.f32.gmra.mxu0 %v432
      %v455 = vpop.f32.mrf.mxu0
      %v456 = vadd.f32 %v428, %v455
      %457 = vdwg.mxu0
      %v458 = vmax.f32 %v456, 0.0
      %s459 = scalar_lea.vmem %s3, 4
      %v460 = vld [vmem:[%s459] sm:$0xf]
      %s461 = scalar_lea.vmem %s4, 4
      %v462 = vld [vmem:[%s461] sm:$0xf]
      %464 = vset.pattern.permute.xlu0 0
      %465 = vperm.xlu0 %464, %v462
      %v466 = vpop.permute.xlu0 %465
      %v469 = vsel %vm430, %v460, 0
      %v472 = vsel %vm434, %v458, 0
      %474 = vmatpush.msra.mxu0 0.0
      %475 = vmatpush.msra.mxu0 0.0
      %476 = vmatpush.msra.mxu0 0.0
      %477 = vmatpush.msra.mxu0 0.0
      %478 = vmatpush.msra.mxu0 0.0
      %479 = vmatpush.msra.mxu0 0.0
      %480 = vmatpush.msra.mxu0 0.0
      %481 = vmatpush.msra.mxu0 0.0
      %482 = vmatpush.msra.mxu0 0.0
      %483 = vmatpush.msra.mxu0 0.0
      %484 = vmatpush.msra.mxu0 0.0
      %485 = vmatpush.msra.mxu0 0.0
      %486 = vmatpush.msra.mxu0 0.0
      %487 = vmatpush.msra.mxu0 0.0
      %488 = vmatpush.msra.mxu0 0.0
      %489 = vmatpush.msra.mxu0 %v472
      %490 = vmatmul.f32.gmra.mxu0 %v469
      %v491 = vpop.f32.mrf.mxu0
      %v492 = vadd.f32 %v466, %v491
      %493 = vdwg.mxu0
      %v494 = vmax.f32 %v492, 0.0
      %495 = vxpose.xlu0.b32.start [1/16] %v421, 128
      %496 = vxpose.xlu0.b32.cont [2/16] 0.0, 128
      %497 = vxpose.xlu0.b32.cont [3/16] 0.0, 128
      %498 = vxpose.xlu0.b32.cont [4/16] 0.0, 128
      %499 = vxpose.xlu0.b32.cont [5/16] 0.0, 128
      %500 = vxpose.xlu0.b32.cont [6/16] 0.0, 128
      %501 = vxpose.xlu0.b32.cont [7/16] 0.0, 128
      %502 = vxpose.xlu0.b32.cont [8/16] 0.0, 128
      %503 = vxpose.xlu0.b32.cont [9/16] 0.0, 128
      %504 = vxpose.xlu0.b32.cont [10/16] 0.0, 128
      %505 = vxpose.xlu0.b32.cont [11/16] 0.0, 128
      %506 = vxpose.xlu0.b32.cont [12/16] 0.0, 128
      %507 = vxpose.xlu0.b32.cont [13/16] 0.0, 128
      %508 = vxpose.xlu0.b32.cont [14/16] 0.0, 128
      %509 = vxpose.xlu0.b32.cont [15/16] 0.0, 128
      %510 = vxpose.xlu0.b32.end [16/16] 0.0, 128
      %v511 = vpop.trf.xlu0
      %v512 = vpop.trf.xlu0
      %v513 = vpop.trf.xlu0
      %v514 = vpop.trf.xlu0
      %v515 = vpop.trf.xlu0
      %v516 = vpop.trf.xlu0
      %v517 = vpop.trf.xlu0
      %v518 = vpop.trf.xlu0
      %v519 = vpop.trf.xlu0
      %v520 = vpop.trf.xlu0
      %v521 = vpop.trf.xlu0
      %v522 = vpop.trf.xlu0
      %v523 = vpop.trf.xlu0
      %v524 = vpop.trf.xlu0
      %v525 = vpop.trf.xlu0
      %v526 = vpop.trf.xlu0
      %v528 = vsel %vm430, %v511, 0
      %v531 = vsel %vm434, %v494, 0
      %533 = vmatpush.msra.mxu0 0.0
      %534 = vmatpush.msra.mxu0 0.0
      %535 = vmatpush.msra.mxu0 0.0
      %536 = vmatpush.msra.mxu0 0.0
      %537 = vmatpush.msra.mxu0 0.0
      %538 = vmatpush.msra.mxu0 0.0
      %539 = vmatpush.msra.mxu0 0.0
      %540 = vmatpush.msra.mxu0 0.0
      %541 = vmatpush.msra.mxu0 0.0
      %542 = vmatpush.msra.mxu0 0.0
      %543 = vmatpush.msra.mxu0 0.0
      %544 = vmatpush.msra.mxu0 0.0
      %545 = vmatpush.msra.mxu0 0.0
      %546 = vmatpush.msra.mxu0 0.0
      %547 = vmatpush.msra.mxu0 0.0
      %548 = vmatpush.msra.mxu0 %v531
      %549 = vmatmul.f32.gmra.mxu0 %v528
      %v550 = vpop.f32.mrf.mxu0
      %v551 = vadd.f32 0.0, %v550
      %552 = vdwg.mxu0
      %v553 = vrot.slane %v551, 4
      %v554 = vmax.f32 %v551, %v553
      %v555 = vrot.slane %v554, 2
      %v556 = vmax.f32 %v554, %v555
      %v557 = vrot.slane %v556, 1
      %v558 = vmax.f32 %v556, %v557
      %v559 = vsub.f32 %v551, %v558
      %v560 = vmul.f32 %v559, 1.442695
      %v561 = vpow.pop %v560
      %v562 = vrot.slane %v561, 4
      %v563 = vadd.f32 %v561, %v562
      %v564 = vrot.slane %v563, 2
      %v565 = vadd.f32 %v563, %v564
      %v566 = vrot.slane %v565, 1
      %v567 = vadd.f32 %v565, %v566
      %v568 = vrcp.pop %v567
      %v569 = vmul.f32 %v561, %v568
      %vm570 = vcmask 64512
      %v572 = vsel %vm570, %v422, 0
      %574 = vmatpush.msra.mxu0 0.0
      %575 = vmatpush.msra.mxu0 0.0
      %576 = vmatpush.msra.mxu0 0.0
      %577 = vmatpush.msra.mxu0 0.0
      %578 = vmatpush.msra.mxu0 0.0
      %579 = vmatpush.msra.mxu0 0.0
      %580 = vmatpush.msra.mxu0 0.0
      %581 = vmatpush.msra.mxu0 0.0
      %582 = vmatpush.msra.mxu0 0.0
      %583 = vmatpush.msra.mxu0 0.0
      %584 = vmatpush.msra.mxu0 0.0
      %585 = vmatpush.msra.mxu0 0.0
      %586 = vmatpush.msra.mxu0 0.0
      %587 = vmatpush.msra.mxu0 0.0
      %588 = vmatpush.msra.mxu0 0.0
      %589 = vmatpush.msra.mxu0 %v569
      %590 = vmatmul.f32.gmra.mxu0 %v572
      %v591 = vpop.f32.mrf.mxu0
      %v592 = vadd.f32 0.0, %v591
      %593 = vdwg.mxu0
      %s594 = scalar_lea.vmem %s3, 8
      %v595 = vld [vmem:[%s594] sm:$0xf]
      %s596 = scalar_lea.vmem %s4, 8
      %v597 = vld [vmem:[%s596] sm:$0xf]
      %599 = vset.pattern.permute.xlu0 0
      %600 = vperm.xlu0 %599, %v597
      %v601 = vpop.permute.xlu0 %600
      %v604 = vsel %vm430, %v595, 0
      %v607 = vsel %vm434, %v592, 0
      %609 = vmatpush.msra.mxu0 0.0
      %610 = vmatpush.msra.mxu0 0.0
      %611 = vmatpush.msra.mxu0 0.0
      %612 = vmatpush.msra.mxu0 0.0
      %613 = vmatpush.msra.mxu0 0.0
      %614 = vmatpush.msra.mxu0 0.0
      %615 = vmatpush.msra.mxu0 0.0
      %616 = vmatpush.msra.mxu0 0.0
      %617 = vmatpush.msra.mxu0 0.0
      %618 = vmatpush.msra.mxu0 0.0
      %619 = vmatpush.msra.mxu0 0.0
      %620 = vmatpush.msra.mxu0 0.0
      %621 = vmatpush.msra.mxu0 0.0
      %622 = vmatpush.msra.mxu0 0.0
      %623 = vmatpush.msra.mxu0 0.0
      %624 = vmatpush.msra.mxu0 %v607
      %625 = vmatmul.f32.gmra.mxu0 %v604
      %v626 = vpop.f32.mrf.mxu0
      %v627 = vadd.f32 %v601, %v626
      %628 = vdwg.mxu0
      %v629 = vmax.f32 %v627, 0.0
      %v630 = vld [vmem:[%s5] sm:$0xff]
      %v631 = vld [vmem:[%s5 + $0x8] sm:$0xff]
      %v632 = vld [vmem:[%s5 + $0x10] sm:$0xff]
      %v633 = vld [vmem:[%s5 + $0x18] sm:$0xff]
      %v634 = vld [vmem:[%s5 + $0x20] sm:$0xff]
      %v635 = vld [vmem:[%s5 + $0x28] sm:$0xff]
      %v636 = vld [vmem:[%s5 + $0x30] sm:$0xff]
      %v637 = vld [vmem:[%s5 + $0x38] sm:$0xff]
      %v638 = vld [vmem:[%s5 + $0x40] sm:$0xff]
      %v639 = vld [vmem:[%s5 + $0x48] sm:$0xff]
      %v640 = vld [vmem:[%s5 + $0x50] sm:$0xff]
      %v641 = vld [vmem:[%s5 + $0x58] sm:$0xff]
      %v642 = vld [vmem:[%s5 + $0x60] sm:$0xff]
      %v643 = vld [vmem:[%s5 + $0x68] sm:$0xff]
      %v644 = vld [vmem:[%s5 + $0x70] sm:$0xff]
      %v645 = vld [vmem:[%s5 + $0x78] sm:$0xff]
      %v646 = vld [vmem:[%s6] sm:$0xff]
      %v647 = vld [vmem:[%s6 + $0x8] sm:$0xff]
      %v648 = vld [vmem:[%s6 + $0x10] sm:$0xff]
      %v649 = vld [vmem:[%s6 + $0x18] sm:$0xff]
      %v650 = vld [vmem:[%s6 + $0x20] sm:$0xff]
      %v651 = vld [vmem:[%s6 + $0x28] sm:$0xff]
      %v652 = vld [vmem:[%s6 + $0x30] sm:$0xff]
      %v653 = vld [vmem:[%s6 + $0x38] sm:$0xff]
      %v654 = vld [vmem:[%s6 + $0x40] sm:$0xff]
      %v655 = vld [vmem:[%s6 + $0x48] sm:$0xff]
      %v656 = vld [vmem:[%s6 + $0x50] sm:$0xff]
      %v657 = vld [vmem:[%s6 + $0x58] sm:$0xff]
      %v658 = vld [vmem:[%s6 + $0x60] sm:$0xff]
      %v659 = vld [vmem:[%s6 + $0x68] sm:$0xff]
      %v660 = vld [vmem:[%s6 + $0x70] sm:$0xff]
      %v661 = vld [vmem:[%s6 + $0x78] sm:$0xff]
      %v663 = vsel %vm430, %v646, 0
      %v666 = vsel %vm430, %v647, 0
      %v669 = vsel %vm430, %v648, 0
      %v672 = vsel %vm430, %v649, 0
      %v675 = vsel %vm430, %v650, 0
      %v678 = vsel %vm430, %v651, 0
      %v681 = vsel %vm430, %v652, 0
      %v684 = vsel %vm430, %v653, 0
      %v687 = vsel %vm430, %v654, 0
      %v690 = vsel %vm430, %v655, 0
      %v693 = vsel %vm430, %v656, 0
      %v696 = vsel %vm430, %v657, 0
      %v699 = vsel %vm430, %v658, 0
      %v702 = vsel %vm430, %v659, 0
      %v705 = vsel %vm430, %v660, 0
      %v708 = vsel %vm430, %v661, 0
      %710 = vmatpush.msra.mxu0 0.0
      %711 = vmatpush.msra.mxu0 0.0
      %712 = vmatpush.msra.mxu0 0.0
      %713 = vmatpush.msra.mxu0 0.0
      %714 = vmatpush.msra.mxu0 0.0
      %715 = vmatpush.msra.mxu0 0.0
      %716 = vmatpush.msra.mxu0 0.0
      %717 = vmatpush.msra.mxu0 0.0
      %718 = vmatpush.msra.mxu0 0.0
      %719 = vmatpush.msra.mxu0 0.0
      %720 = vmatpush.msra.mxu0 0.0
      %721 = vmatpush.msra.mxu0 0.0
      %722 = vmatpush.msra.mxu0 0.0
      %723 = vmatpush.msra.mxu0 0.0
      %724 = vmatpush.msra.mxu0 0.0
      %725 = vmatpush.msra.mxu0 %v436
      %726 = vmatmul.f32.gmra.mxu0 %v663
      %v727 = vpop.f32.mrf.mxu0
      %v728 = vadd.f32 0.0, %v727
      %729 = vmatmul.f32.gmra.mxu0 %v666
      %v730 = vpop.f32.mrf.mxu0
      %v731 = vadd.f32 0.0, %v730
      %732 = vmatmul.f32.gmra.mxu0 %v669
      %v733 = vpop.f32.mrf.mxu0
      %v734 = vadd.f32 0.0, %v733
      %735 = vmatmul.f32.gmra.mxu0 %v672
      %v736 = vpop.f32.mrf.mxu0
      %v737 = vadd.f32 0.0, %v736
      %738 = vmatmul.f32.gmra.mxu0 %v675
      %v739 = vpop.f32.mrf.mxu0
      %v740 = vadd.f32 0.0, %v739
      %741 = vmatmul.f32.gmra.mxu0 %v678
      %v742 = vpop.f32.mrf.mxu0
      %v743 = vadd.f32 0.0, %v742
      %744 = vmatmul.f32.gmra.mxu0 %v681
      %v745 = vpop.f32.mrf.mxu0
      %v746 = vadd.f32 0.0, %v745
      %747 = vmatmul.f32.gmra.mxu0 %v684
      %v748 = vpop.f32.mrf.mxu0
      %v749 = vadd.f32 0.0, %v748
      %750 = vmatmul.f32.gmra.mxu0 %v687
      %v751 = vpop.f32.mrf.mxu0
      %v752 = vadd.f32 0.0, %v751
      %753 = vmatmul.f32.gmra.mxu0 %v690
      %v754 = vpop.f32.mrf.mxu0
      %v755 = vadd.f32 0.0, %v754
      %756 = vmatmul.f32.gmra.mxu0 %v693
      %v757 = vpop.f32.mrf.mxu0
      %v758 = vadd.f32 0.0, %v757
      %759 = vmatmul.f32.gmra.mxu0 %v696
      %v760 = vpop.f32.mrf.mxu0
      %v761 = vadd.f32 0.0, %v760
      %762 = vmatmul.f32.gmra.mxu0 %v699
      %v763 = vpop.f32.mrf.mxu0
      %v764 = vadd.f32 0.0, %v763
      %765 = vmatmul.f32.gmra.mxu0 %v702
      %v766 = vpop.f32.mrf.mxu0
      %v767 = vadd.f32 0.0, %v766
      %768 = vmatmul.f32.gmra.mxu0 %v705
      %v769 = vpop.f32.mrf.mxu0
      %v770 = vadd.f32 0.0, %v769
      %771 = vmatmul.f32.gmra.mxu0 %v708
      %v772 = vpop.f32.mrf.mxu0
      %v773 = vadd.f32 0.0, %v772
      %774 = vdwg.mxu0
      %v776 = vsel %vm430, %v630, 0
      %v779 = vsel %vm430, %v631, 0
      %v782 = vsel %vm430, %v632, 0
      %v785 = vsel %vm430, %v633, 0
      %v788 = vsel %vm430, %v634, 0
      %v791 = vsel %vm430, %v635, 0
      %v794 = vsel %vm430, %v636, 0
      %v797 = vsel %vm430, %v637, 0
      %v800 = vsel %vm430, %v638, 0
      %v803 = vsel %vm430, %v639, 0
      %v806 = vsel %vm430, %v640, 0
      %v809 = vsel %vm430, %v641, 0
      %v812 = vsel %vm430, %v642, 0
      %v815 = vsel %vm430, %v643, 0
      %v818 = vsel %vm430, %v644, 0
      %v821 = vsel %vm430, %v645, 0
      %v824 = vsel %vm434, %v629, 0
      %826 = vmatpush.msra.mxu0 0.0
      %827 = vmatpush.msra.mxu0 0.0
      %828 = vmatpush.msra.mxu0 0.0
      %829 = vmatpush.msra.mxu0 0.0
      %830 = vmatpush.msra.mxu0 0.0
      %831 = vmatpush.msra.mxu0 0.0
      %832 = vmatpush.msra.mxu0 0.0
      %833 = vmatpush.msra.mxu0 0.0
      %834 = vmatpush.msra.mxu0 0.0
      %835 = vmatpush.msra.mxu0 0.0
      %836 = vmatpush.msra.mxu0 0.0
      %837 = vmatpush.msra.mxu0 0.0
      %838 = vmatpush.msra.mxu0 0.0
      %839 = vmatpush.msra.mxu0 0.0
      %840 = vmatpush.msra.mxu0 0.0
      %841 = vmatpush.msra.mxu0 %v824
      %842 = vmatmul.f32.gmra.mxu0 %v776
      %v843 = vpop.f32.mrf.mxu0
      %v844 = vadd.f32 %v728, %v843
      %845 = vmatmul.f32.gmra.mxu0 %v779
      %v846 = vpop.f32.mrf.mxu0
      %v847 = vadd.f32 %v731, %v846
      %848 = vmatmul.f32.gmra.mxu0 %v782
      %v849 = vpop.f32.mrf.mxu0
      %v850 = vadd.f32 %v734, %v849
      %851 = vmatmul.f32.gmra.mxu0 %v785
      %v852 = vpop.f32.mrf.mxu0
      %v853 = vadd.f32 %v737, %v852
      %854 = vmatmul.f32.gmra.mxu0 %v788
      %v855 = vpop.f32.mrf.mxu0
      %v856 = vadd.f32 %v740, %v855
      %857 = vmatmul.f32.gmra.mxu0 %v791
      %v858 = vpop.f32.mrf.mxu0
      %v859 = vadd.f32 %v743, %v858
      %860 = vmatmul.f32.gmra.mxu0 %v794
      %v861 = vpop.f32.mrf.mxu0
      %v862 = vadd.f32 %v746, %v861
      %863 = vmatmul.f32.gmra.mxu0 %v797
      %v864 = vpop.f32.mrf.mxu0
      %v865 = vadd.f32 %v749, %v864
      %866 = vmatmul.f32.gmra.mxu0 %v800
      %v867 = vpop.f32.mrf.mxu0
      %v868 = vadd.f32 %v752, %v867
      %869 = vmatmul.f32.gmra.mxu0 %v803
      %v870 = vpop.f32.mrf.mxu0
      %v871 = vadd.f32 %v755, %v870
      %872 = vmatmul.f32.gmra.mxu0 %v806
      %v873 = vpop.f32.mrf.mxu0
      %v874 = vadd.f32 %v758, %v873
      %875 = vmatmul.f32.gmra.mxu0 %v809
      %v876 = vpop.f32.mrf.mxu0
      %v877 = vadd.f32 %v761, %v876
      %878 = vmatmul.f32.gmra.mxu0 %v812
      %v879 = vpop.f32.mrf.mxu0
      %v880 = vadd.f32 %v764, %v879
      %881 = vmatmul.f32.gmra.mxu0 %v815
      %v882 = vpop.f32.mrf.mxu0
      %v883 = vadd.f32 %v767, %v882
      %884 = vmatmul.f32.gmra.mxu0 %v818
      %v885 = vpop.f32.mrf.mxu0
      %v886 = vadd.f32 %v770, %v885
      %887 = vmatmul.f32.gmra.mxu0 %v821
      %v888 = vpop.f32.mrf.mxu0
      %v889 = vadd.f32 %v773, %v888
      %890 = vdwg.mxu0
      %v891 = vld [vmem:[%s7] sm:$0xff]
      %v892 = vld [vmem:[%s7 + $0x8] sm:$0xff]
      %v893 = vld [vmem:[%s7 + $0x10] sm:$0xff]
      %v894 = vld [vmem:[%s7 + $0x18] sm:$0xff]
      %v895 = vld [vmem:[%s7 + $0x20] sm:$0xff]
      %v896 = vld [vmem:[%s7 + $0x28] sm:$0xff]
      %v897 = vld [vmem:[%s7 + $0x30] sm:$0xff]
      %v898 = vld [vmem:[%s7 + $0x38] sm:$0xff]
      %v899 = vld [vmem:[%s7 + $0x40] sm:$0xff]
      %v900 = vld [vmem:[%s7 + $0x48] sm:$0xff]
      %v901 = vld [vmem:[%s7 + $0x50] sm:$0xff]
      %v902 = vld [vmem:[%s7 + $0x58] sm:$0xff]
      %v903 = vld [vmem:[%s7 + $0x60] sm:$0xff]
      %v904 = vld [vmem:[%s7 + $0x68] sm:$0xff]
      %v905 = vld [vmem:[%s7 + $0x70] sm:$0xff]
      %v906 = vld [vmem:[%s7 + $0x78] sm:$0xff]
      %908 = vset.pattern.permute.xlu0 0
      %909 = vperm.xlu0 %908, %v891
      %v910 = vpop.permute.xlu0 %909
      %913 = vset.pattern.permute.xlu0 0
      %914 = vperm.xlu0 %913, %v892
      %v915 = vpop.permute.xlu0 %914
      %918 = vset.pattern.permute.xlu0 0
      %919 = vperm.xlu0 %918, %v893
      %v920 = vpop.permute.xlu0 %919
      %923 = vset.pattern.permute.xlu0 0
      %924 = vperm.xlu0 %923, %v894
      %v925 = vpop.permute.xlu0 %924
      %928 = vset.pattern.permute.xlu0 0
      %929 = vperm.xlu0 %928, %v895
      %v930 = vpop.permute.xlu0 %929
      %933 = vset.pattern.permute.xlu0 0
      %934 = vperm.xlu0 %933, %v896
      %v935 = vpop.permute.xlu0 %934
      %938 = vset.pattern.permute.xlu0 0
      %939 = vperm.xlu0 %938, %v897
      %v940 = vpop.permute.xlu0 %939
      %943 = vset.pattern.permute.xlu0 0
      %944 = vperm.xlu0 %943, %v898
      %v945 = vpop.permute.xlu0 %944
      %948 = vset.pattern.permute.xlu0 0
      %949 = vperm.xlu0 %948, %v899
      %v950 = vpop.permute.xlu0 %949
      %953 = vset.pattern.permute.xlu0 0
      %954 = vperm.xlu0 %953, %v900
      %v955 = vpop.permute.xlu0 %954
      %958 = vset.pattern.permute.xlu0 0
      %959 = vperm.xlu0 %958, %v901
      %v960 = vpop.permute.xlu0 %959
      %963 = vset.pattern.permute.xlu0 0
      %964 = vperm.xlu0 %963, %v902
      %v965 = vpop.permute.xlu0 %964
      %968 = vset.pattern.permute.xlu0 0
      %969 = vperm.xlu0 %968, %v903
      %v970 = vpop.permute.xlu0 %969
      %973 = vset.pattern.permute.xlu0 0
      %974 = vperm.xlu0 %973, %v904
      %v975 = vpop.permute.xlu0 %974
      %978 = vset.pattern.permute.xlu0 0
      %979 = vperm.xlu0 %978, %v905
      %v980 = vpop.permute.xlu0 %979
      %983 = vset.pattern.permute.xlu0 0
      %984 = vperm.xlu0 %983, %v906
      %v985 = vpop.permute.xlu0 %984
      %v987 = vadd.f32 %v844, %v910
      %v988 = vadd.f32 %v847, %v915
      %v989 = vadd.f32 %v850, %v920
      %v990 = vadd.f32 %v853, %v925
      %v991 = vadd.f32 %v856, %v930
      %v992 = vadd.f32 %v859, %v935
      %v993 = vadd.f32 %v862, %v940
      %v994 = vadd.f32 %v865, %v945
      %v995 = vadd.f32 %v868, %v950
      %v996 = vadd.f32 %v871, %v955
      %v997 = vadd.f32 %v874, %v960
      %v998 = vadd.f32 %v877, %v965
      %v999 = vadd.f32 %v880, %v970
      %v1000 = vadd.f32 %v883, %v975
      %v1001 = vadd.f32 %v886, %v980
      %v1002 = vadd.f32 %v889, %v985
      %v1003 = vmax.f32 %v987, 0.0
      %v1004 = vmax.f32 %v988, 0.0
      %v1005 = vmax.f32 %v989, 0.0
      %v1006 = vmax.f32 %v990, 0.0
      %v1007 = vmax.f32 %v991, 0.0
      %v1008 = vmax.f32 %v992, 0.0
      %v1009 = vmax.f32 %v993, 0.0
      %v1010 = vmax.f32 %v994, 0.0
      %v1011 = vmax.f32 %v995, 0.0
      %v1012 = vmax.f32 %v996, 0.0
      %v1013 = vmax.f32 %v997, 0.0
      %v1014 = vmax.f32 %v998, 0.0
      %v1015 = vmax.f32 %v999, 0.0
      %v1016 = vmax.f32 %v1000, 0.0
      %v1017 = vmax.f32 %v1001, 0.0
      %v1018 = vmax.f32 %v1002, 0.0
      %v1019 = vld [vmem:[%s8] sm:$0xff]
      %v1020 = vld [vmem:[%s9] sm:$0xff]
      %1022 = vset.pattern.permute.xlu0 0
      %1023 = vperm.xlu0 %1022, %v1020
      %v1024 = vpop.permute.xlu0 %1023
      %1026 = vmatpush.msra.mxu0 %v1018
      %1027 = vmatpush.msra.mxu0 %v1017
      %1028 = vmatpush.msra.mxu0 %v1016
      %1029 = vmatpush.msra.mxu0 %v1015
      %1030 = vmatpush.msra.mxu0 %v1014
      %1031 = vmatpush.msra.mxu0 %v1013
      %1032 = vmatpush.msra.mxu0 %v1012
      %1033 = vmatpush.msra.mxu0 %v1011
      %1034 = vmatpush.msra.mxu0 %v1010
      %1035 = vmatpush.msra.mxu0 %v1009
      %1036 = vmatpush.msra.mxu0 %v1008
      %1037 = vmatpush.msra.mxu0 %v1007
      %1038 = vmatpush.msra.mxu0 %v1006
      %1039 = vmatpush.msra.mxu0 %v1005
      %1040 = vmatpush.msra.mxu0 %v1004
      %1041 = vmatpush.msra.mxu0 %v1003
      %1042 = vmatmul.f32.gmra.mxu0 %v1019
      %v1043 = vpop.f32.mrf.mxu0
      %v1044 = vadd.f32 %v1024, %v1043
      %1045 = vdwg.mxu0
      %1046 = vst [vmem:[%s419] sm:$0xff] %v1044
      %p1047 = scmp.lt.s32.totalorder %s25, 1
      %s1048 = scalar_select %p1047, %s25, 1
      %p1049 = scmp.lt.s32.totalorder %s26, 0
      %s1050 = scalar_select %p1049, %s26, 0
      %s1051 = sadd.s32 %s1050, %s1048
      %s1052 = smul.addr %s1051, 8
      %s1053 = scalar_lea.vmem %s10, %s1052
      // Predicated region
      $region61: #{ocr_pallas.3} parent=59 // pred_check
        %p1054 = pneg %p280
      $region62: #{ocr_pallas.3} parent=59 // pred_check_branch
        %1056 = sbr.rel (%p1054) target = $region64
      $region63: #{ocr_pallas.3} parent=59 // pred_region
        _
      $region64: #{ocr_pallas.3} parent=59 // pred_fallthru
        _
    $region60: #{ocr_pallas.3} parent=5 // pred_fallthru
      _
    %p1057 = scmp.le.s32.totalorder 2, %s16
    // Predicated region
    $region65: #{ocr_pallas.3} parent=5 // pred_check
      %p1058 = pneg %p1057
    $region66: #{ocr_pallas.3} parent=5 // pred_check_branch
      %1060 = sbr.rel (%p1058) target = $region68
    $region67: #{ocr_pallas.3} parent=5 // pred_region
      %s1061 = ssub.s32 %s16, 2
      // Predicated region
      $region69: #{ocr_pallas.3} parent=67 // pred_check
        %p1062 = pneg %p286
      $region70: #{ocr_pallas.3} parent=67 // pred_check_branch
        %1064 = sbr.rel (%p1062) target = $region72
      $region71: #{ocr_pallas.3} parent=67 // pred_region
        %p1065 = scmp.lt.s32.totalorder %s27, 1
        %s1066 = scalar_select %p1065, %s27, 1
        %p1067 = scmp.lt.s32.totalorder %s28, 0
        %s1068 = scalar_select %p1067, %s28, 0
        %s1069 = sadd.s32 %s1068, %s1066
        %s1070 = smul.addr %s1069, 8
        %s1071 = scalar_lea.vmem %s10, %s1070
      $region72: #{ocr_pallas.3} parent=67 // pred_fallthru
        _
    $region68: #{ocr_pallas.3} parent=5 // pred_fallthru
      _
  $region6: #{ocr_pallas.3} parent=0 // loop_footer
    %s20 = sadd.s32 1, %s16
  $region7: #{ocr_pallas.3} parent=0 // loop_footer_branch
    %15 = sbr.rel target = $region3
  $region8: #{ocr_pallas.3} parent=0 // loop_exit
    _

</llo_original>
